<compile_context>
chip_gen: v7x
topology: tpu7x:2x2x1
jax: 0.10.0
libtpu: 0.0.40
codegen_flags: <defaults>
</compile_context>

<pallas_src>
import jax
import jax.numpy as jnp
from jax import lax
from jax.experimental import pallas as pl
from jax.experimental.pallas import tpu as pltpu

LAYERS = (1, 8, 8, 8, 1)     # matches PINN([1, 8, 8, 8, 1])
LANES = 128                  # sample points per lane row
CHUNK_ROWS = 8               # one vreg of sublanes per feature plane
UNROLL = 2                   # independent chunks interleaved per loop step
ALIGN = CHUNK_ROWS * UNROLL  # block_rows granularity (16 rows = 2048 points)


def _param_offsets(layers=LAYERS):
    """(w_offset, b_offset) of each layer inside the packed parameter vector."""
    offs, off = [], 0
    for fin, fout in zip(layers[:-1], layers[1:]):
        offs.append((off, off + fin * fout))
        off += fin * fout + fout
    return tuple(offs), off


_OFFS, _NPARAMS = _param_offsets()


def _cdiv(a, b):
    return -(-a // b)


def _ceil_to(x, m):
    return _cdiv(x, m) * m


def pinn_kernel(params_ref, x_ref, o_ref):
    """params_ref: SMEM f32[_NPARAMS] (scalar prefetch);
    x_ref / o_ref: VMEM f32[block_rows, 128]."""
    block_rows = x_ref.shape[0]
    n_steps = block_rows // ALIGN

    # Hoist every weight/bias scalar read (SMEM -> scalar regs) out of the loop.
    w, b = [], []
    for li, (fin, fout) in enumerate(zip(LAYERS[:-1], LAYERS[1:])):
        w_off, b_off = _OFFS[li]
        w.append([[params_ref[w_off + k * fout + j] for j in range(fout)]
                  for k in range(fin)])
        b.append([params_ref[b_off + j] for j in range(fout)])

    def compute_chunk(r0):
        h = [x_ref[pl.ds(r0, CHUNK_ROWS), :]]            # input: one feature plane
        for li, (fin, fout) in enumerate(zip(LAYERS[:-1], LAYERS[1:])):
            nh = []
            for j in range(fout):
                acc = h[0] * w[li][0][j] + b[li][j]
                for k in range(1, fin):
                    acc = acc + h[k] * w[li][k][j]
                nh.append(jnp.tanh(acc))                 # VPU MACs + EUP tanh
            h = nh
        o_ref[pl.ds(r0, CHUNK_ROWS), :] = h[0]

    def step(s, carry):
        base = pl.multiple_of(s * ALIGN, ALIGN)
        # Two independent chunks in one basic block: chunk B's MACs hide
        # chunk A's per-layer tanh FIFO drain (and vice versa).
        compute_chunk(base)
        compute_chunk(pl.multiple_of(base + CHUNK_ROWS, CHUNK_ROWS))
        return carry

    lax.fori_loop(0, n_steps, step, 0)


def pack_params(params):
    """Pack (w1, b1, ..., w4, b4) — w as (in, out), b as (out,) — into one f32 vec."""
    flat = []
    for i in range(0, len(params), 2):
        flat.append(params[i].reshape(-1))       # w[k, j] at k * fout + j
        flat.append(params[i + 1].reshape(-1))   # b[j]
    packed = jnp.concatenate(flat).astype(jnp.float32)
    assert packed.shape == (_NPARAMS,)
    return packed


def pinn_forward(x, params, *, block_rows=4096):
    """Equivalent of PINN.forward for 1-D x: u = net(x.view(-1, 1)); return u[:, 0]."""
    n = x.shape[0]
    rows = _cdiv(n, LANES)                                  # ceil(n / 128)

    # Padding policy: pad waste bounded by < ALIGN rows per block.
    bmax = max(ALIGN, _ceil_to(block_rows, ALIGN))
    num_blocks = _cdiv(rows, bmax)
    if num_blocks == 1 and rows >= 2 * ALIGN:
        num_blocks = 2          # v7x: >=2 parallel blocks -> both TensorCores
    block_rows_eff = _ceil_to(_cdiv(rows, num_blocks), ALIGN)
    rows_pad = num_blocks * block_rows_eff
    n_pad = rows_pad * LANES

    x_pad = jnp.zeros((n_pad,), jnp.float32).at[:n].set(x.astype(jnp.float32))
    x2 = x_pad.reshape(rows_pad, LANES)                     # lane-dense batch
    packed = pack_params(params)

    out = pl.pallas_call(
        pinn_kernel,
        out_shape=jax.ShapeDtypeStruct((rows_pad, LANES), jnp.float32),
        grid_spec=pltpu.PrefetchScalarGridSpec(
            num_scalar_prefetch=1,                          # packed params -> SMEM once
            grid=(num_blocks,),
            in_specs=[
                pl.BlockSpec((block_rows_eff, LANES), lambda i, p: (i, 0)),
            ],
            out_specs=pl.BlockSpec((block_rows_eff, LANES), lambda i, p: (i, 0)),
        ),
        compiler_params=pltpu.CompilerParams(
            dimension_semantics=("parallel",)),
    )(packed, x2)

    return out.reshape(n_pad)[:n]


def init_params(key, layers=LAYERS):
    """torch.nn.Linear-style init; weights stored as (in, out) = W_torch.T."""
    params = []
    for fin, fout in zip(layers[:-1], layers[1:]):
        key, kw, kb = jax.random.split(key, 3)
        bound = 1.0 / float(fin) ** 0.5
        wgt = jax.random.uniform(kw, (fin, fout), jnp.float32, -bound, bound)
        bias = jax.random.uniform(kb, (fout,), jnp.float32, -bound, bound)
        params += [wgt, bias]
    return tuple(params)


def pinn_forward_ref(x, params):
    """Pure-JAX reference of the same forward, for a correctness check."""
    h = x.reshape(-1, 1).astype(jnp.float32)
    for i in range(0, len(params), 2):
        wgt, bias = params[i], params[i + 1]
        h = jnp.tanh(h @ wgt + bias[None, :])
    return h[:, 0]


if __name__ == "__main__":
    key = jax.random.PRNGKey(0)
    params = init_params(key)

    # Original workload: torch.linspace(0, 10, 1000).
    N = 1000
    l = jnp.linspace(0.0, 10.0, N, dtype=jnp.float32)
    y = jax.block_until_ready(pinn_forward(l, params))
    y_ref = pinn_forward_ref(l, params)
    assert y.shape == (N,)
    assert jnp.allclose(y, y_ref, atol=1e-4, rtol=1e-4)

    # Second case: multiple grid blocks (>=2, exercises the v7x path) + ragged tail.
    N2 = 5000
    x_big = jax.random.uniform(jax.random.PRNGKey(0), (N2,), jnp.float32, 0.0, 10.0)
    y2 = jax.block_until_ready(pinn_forward(x_big, params, block_rows=64))
    assert jnp.allclose(y2, pinn_forward_ref(x_big, params), atol=1e-4, rtol=1e-4)

    print("KERNEL_OK")
</pallas_src>

<mosaic_0001>
module attributes {stable_mosaic.version = 11 : i64} {
  func.func @pinn_kernel(%arg0: i32, %arg1: memref<169xf32, #tpu.memory_space<smem>>, %arg2: memref<16x128xf32, #tpu.memory_space<vmem>>, %arg3: memref<16x128xf32, #tpu.memory_space<vmem>>) attributes {dimension_semantics = [#tpu.dimension_semantics<parallel>], iteration_bounds = array<i64: 1>, scalar_prefetch = 1 : i64, scratch_operands = 0 : i64, tpu.core_type = #tpu.core_type<tc>, window_params = [{transform_indices = @transform_0, window_bounds = array<i64: 16, 128>}, {transform_indices = @transform_1, window_bounds = array<i64: 16, 128>}]} {
    %c0 = arith.constant 0 : index
    %0 = memref.load %arg1[%c0] : memref<169xf32, #tpu.memory_space<smem>>
    %c1 = arith.constant 1 : index
    %1 = memref.load %arg1[%c1] : memref<169xf32, #tpu.memory_space<smem>>
    %c2 = arith.constant 2 : index
    %2 = memref.load %arg1[%c2] : memref<169xf32, #tpu.memory_space<smem>>
    %c3 = arith.constant 3 : index
    %3 = memref.load %arg1[%c3] : memref<169xf32, #tpu.memory_space<smem>>
    %c4 = arith.constant 4 : index
    %4 = memref.load %arg1[%c4] : memref<169xf32, #tpu.memory_space<smem>>
    %c5 = arith.constant 5 : index
    %5 = memref.load %arg1[%c5] : memref<169xf32, #tpu.memory_space<smem>>
    %c6 = arith.constant 6 : index
    %6 = memref.load %arg1[%c6] : memref<169xf32, #tpu.memory_space<smem>>
    %c7 = arith.constant 7 : index
    %7 = memref.load %arg1[%c7] : memref<169xf32, #tpu.memory_space<smem>>
    %c8 = arith.constant 8 : index
    %8 = memref.load %arg1[%c8] : memref<169xf32, #tpu.memory_space<smem>>
    %c9 = arith.constant 9 : index
    %9 = memref.load %arg1[%c9] : memref<169xf32, #tpu.memory_space<smem>>
    %c10 = arith.constant 10 : index
    %10 = memref.load %arg1[%c10] : memref<169xf32, #tpu.memory_space<smem>>
    %c11 = arith.constant 11 : index
    %11 = memref.load %arg1[%c11] : memref<169xf32, #tpu.memory_space<smem>>
    %c12 = arith.constant 12 : index
    %12 = memref.load %arg1[%c12] : memref<169xf32, #tpu.memory_space<smem>>
    %c13 = arith.constant 13 : index
    %13 = memref.load %arg1[%c13] : memref<169xf32, #tpu.memory_space<smem>>
    %c14 = arith.constant 14 : index
    %14 = memref.load %arg1[%c14] : memref<169xf32, #tpu.memory_space<smem>>
    %c15 = arith.constant 15 : index
    %15 = memref.load %arg1[%c15] : memref<169xf32, #tpu.memory_space<smem>>
    %c16 = arith.constant 16 : index
    %16 = memref.load %arg1[%c16] : memref<169xf32, #tpu.memory_space<smem>>
    %c17 = arith.constant 17 : index
    %17 = memref.load %arg1[%c17] : memref<169xf32, #tpu.memory_space<smem>>
    %c18 = arith.constant 18 : index
    %18 = memref.load %arg1[%c18] : memref<169xf32, #tpu.memory_space<smem>>
    %c19 = arith.constant 19 : index
    %19 = memref.load %arg1[%c19] : memref<169xf32, #tpu.memory_space<smem>>
    %c20 = arith.constant 20 : index
    %20 = memref.load %arg1[%c20] : memref<169xf32, #tpu.memory_space<smem>>
    %c21 = arith.constant 21 : index
    %21 = memref.load %arg1[%c21] : memref<169xf32, #tpu.memory_space<smem>>
    %c22 = arith.constant 22 : index
    %22 = memref.load %arg1[%c22] : memref<169xf32, #tpu.memory_space<smem>>
    %c23 = arith.constant 23 : index
    %23 = memref.load %arg1[%c23] : memref<169xf32, #tpu.memory_space<smem>>
    %c24 = arith.constant 24 : index
    %24 = memref.load %arg1[%c24] : memref<169xf32, #tpu.memory_space<smem>>
    %c25 = arith.constant 25 : index
    %25 = memref.load %arg1[%c25] : memref<169xf32, #tpu.memory_space<smem>>
    %c26 = arith.constant 26 : index
    %26 = memref.load %arg1[%c26] : memref<169xf32, #tpu.memory_space<smem>>
    %c27 = arith.constant 27 : index
    %27 = memref.load %arg1[%c27] : memref<169xf32, #tpu.memory_space<smem>>
    %c28 = arith.constant 28 : index
    %28 = memref.load %arg1[%c28] : memref<169xf32, #tpu.memory_space<smem>>
    %c29 = arith.constant 29 : index
    %29 = memref.load %arg1[%c29] : memref<169xf32, #tpu.memory_space<smem>>
    %c30 = arith.constant 30 : index
    %30 = memref.load %arg1[%c30] : memref<169xf32, #tpu.memory_space<smem>>
    %c31 = arith.constant 31 : index
    %31 = memref.load %arg1[%c31] : memref<169xf32, #tpu.memory_space<smem>>
    %c32 = arith.constant 32 : index
    %32 = memref.load %arg1[%c32] : memref<169xf32, #tpu.memory_space<smem>>
    %c33 = arith.constant 33 : index
    %33 = memref.load %arg1[%c33] : memref<169xf32, #tpu.memory_space<smem>>
    %c34 = arith.constant 34 : index
    %34 = memref.load %arg1[%c34] : memref<169xf32, #tpu.memory_space<smem>>
    %c35 = arith.constant 35 : index
    %35 = memref.load %arg1[%c35] : memref<169xf32, #tpu.memory_space<smem>>
    %c36 = arith.constant 36 : index
    %36 = memref.load %arg1[%c36] : memref<169xf32, #tpu.memory_space<smem>>
    %c37 = arith.constant 37 : index
    %37 = memref.load %arg1[%c37] : memref<169xf32, #tpu.memory_space<smem>>
    %c38 = arith.constant 38 : index
    %38 = memref.load %arg1[%c38] : memref<169xf32, #tpu.memory_space<smem>>
    %c39 = arith.constant 39 : index
    %39 = memref.load %arg1[%c39] : memref<169xf32, #tpu.memory_space<smem>>
    %c40 = arith.constant 40 : index
    %40 = memref.load %arg1[%c40] : memref<169xf32, #tpu.memory_space<smem>>
    %c41 = arith.constant 41 : index
    %41 = memref.load %arg1[%c41] : memref<169xf32, #tpu.memory_space<smem>>
    %c42 = arith.constant 42 : index
    %42 = memref.load %arg1[%c42] : memref<169xf32, #tpu.memory_space<smem>>
    %c43 = arith.constant 43 : index
    %43 = memref.load %arg1[%c43] : memref<169xf32, #tpu.memory_space<smem>>
    %c44 = arith.constant 44 : index
    %44 = memref.load %arg1[%c44] : memref<169xf32, #tpu.memory_space<smem>>
    %c45 = arith.constant 45 : index
    %45 = memref.load %arg1[%c45] : memref<169xf32, #tpu.memory_space<smem>>
    %c46 = arith.constant 46 : index
    %46 = memref.load %arg1[%c46] : memref<169xf32, #tpu.memory_space<smem>>
    %c47 = arith.constant 47 : index
    %47 = memref.load %arg1[%c47] : memref<169xf32, #tpu.memory_space<smem>>
    %c48 = arith.constant 48 : index
    %48 = memref.load %arg1[%c48] : memref<169xf32, #tpu.memory_space<smem>>
    %c49 = arith.constant 49 : index
    %49 = memref.load %arg1[%c49] : memref<169xf32, #tpu.memory_space<smem>>
    %c50 = arith.constant 50 : index
    %50 = memref.load %arg1[%c50] : memref<169xf32, #tpu.memory_space<smem>>
    %c51 = arith.constant 51 : index
    %51 = memref.load %arg1[%c51] : memref<169xf32, #tpu.memory_space<smem>>
    %c52 = arith.constant 52 : index
    %52 = memref.load %arg1[%c52] : memref<169xf32, #tpu.memory_space<smem>>
    %c53 = arith.constant 53 : index
    %53 = memref.load %arg1[%c53] : memref<169xf32, #tpu.memory_space<smem>>
    %c54 = arith.constant 54 : index
    %54 = memref.load %arg1[%c54] : memref<169xf32, #tpu.memory_space<smem>>
    %c55 = arith.constant 55 : index
    %55 = memref.load %arg1[%c55] : memref<169xf32, #tpu.memory_space<smem>>
    %c56 = arith.constant 56 : index
    %56 = memref.load %arg1[%c56] : memref<169xf32, #tpu.memory_space<smem>>
    %c57 = arith.constant 57 : index
    %57 = memref.load %arg1[%c57] : memref<169xf32, #tpu.memory_space<smem>>
    %c58 = arith.constant 58 : index
    %58 = memref.load %arg1[%c58] : memref<169xf32, #tpu.memory_space<smem>>
    %c59 = arith.constant 59 : index
    %59 = memref.load %arg1[%c59] : memref<169xf32, #tpu.memory_space<smem>>
    %c60 = arith.constant 60 : index
    %60 = memref.load %arg1[%c60] : memref<169xf32, #tpu.memory_space<smem>>
    %c61 = arith.constant 61 : index
    %61 = memref.load %arg1[%c61] : memref<169xf32, #tpu.memory_space<smem>>
    %c62 = arith.constant 62 : index
    %62 = memref.load %arg1[%c62] : memref<169xf32, #tpu.memory_space<smem>>
    %c63 = arith.constant 63 : index
    %63 = memref.load %arg1[%c63] : memref<169xf32, #tpu.memory_space<smem>>
    %c64 = arith.constant 64 : index
    %64 = memref.load %arg1[%c64] : memref<169xf32, #tpu.memory_space<smem>>
    %c65 = arith.constant 65 : index
    %65 = memref.load %arg1[%c65] : memref<169xf32, #tpu.memory_space<smem>>
    %c66 = arith.constant 66 : index
    %66 = memref.load %arg1[%c66] : memref<169xf32, #tpu.memory_space<smem>>
    %c67 = arith.constant 67 : index
    %67 = memref.load %arg1[%c67] : memref<169xf32, #tpu.memory_space<smem>>
    %c68 = arith.constant 68 : index
    %68 = memref.load %arg1[%c68] : memref<169xf32, #tpu.memory_space<smem>>
    %c69 = arith.constant 69 : index
    %69 = memref.load %arg1[%c69] : memref<169xf32, #tpu.memory_space<smem>>
    %c70 = arith.constant 70 : index
    %70 = memref.load %arg1[%c70] : memref<169xf32, #tpu.memory_space<smem>>
    %c71 = arith.constant 71 : index
    %71 = memref.load %arg1[%c71] : memref<169xf32, #tpu.memory_space<smem>>
    %c72 = arith.constant 72 : index
    %72 = memref.load %arg1[%c72] : memref<169xf32, #tpu.memory_space<smem>>
    %c73 = arith.constant 73 : index
    %73 = memref.load %arg1[%c73] : memref<169xf32, #tpu.memory_space<smem>>
    %c74 = arith.constant 74 : index
    %74 = memref.load %arg1[%c74] : memref<169xf32, #tpu.memory_space<smem>>
    %c75 = arith.constant 75 : index
    %75 = memref.load %arg1[%c75] : memref<169xf32, #tpu.memory_space<smem>>
    %c76 = arith.constant 76 : index
    %76 = memref.load %arg1[%c76] : memref<169xf32, #tpu.memory_space<smem>>
    %c77 = arith.constant 77 : index
    %77 = memref.load %arg1[%c77] : memref<169xf32, #tpu.memory_space<smem>>
    %c78 = arith.constant 78 : index
    %78 = memref.load %arg1[%c78] : memref<169xf32, #tpu.memory_space<smem>>
    %c79 = arith.constant 79 : index
    %79 = memref.load %arg1[%c79] : memref<169xf32, #tpu.memory_space<smem>>
    %c80 = arith.constant 80 : index
    %80 = memref.load %arg1[%c80] : memref<169xf32, #tpu.memory_space<smem>>
    %c81 = arith.constant 81 : index
    %81 = memref.load %arg1[%c81] : memref<169xf32, #tpu.memory_space<smem>>
    %c82 = arith.constant 82 : index
    %82 = memref.load %arg1[%c82] : memref<169xf32, #tpu.memory_space<smem>>
    %c83 = arith.constant 83 : index
    %83 = memref.load %arg1[%c83] : memref<169xf32, #tpu.memory_space<smem>>
    %c84 = arith.constant 84 : index
    %84 = memref.load %arg1[%c84] : memref<169xf32, #tpu.memory_space<smem>>
    %c85 = arith.constant 85 : index
    %85 = memref.load %arg1[%c85] : memref<169xf32, #tpu.memory_space<smem>>
    %c86 = arith.constant 86 : index
    %86 = memref.load %arg1[%c86] : memref<169xf32, #tpu.memory_space<smem>>
    %c87 = arith.constant 87 : index
    %87 = memref.load %arg1[%c87] : memref<169xf32, #tpu.memory_space<smem>>
    %c88 = arith.constant 88 : index
    %88 = memref.load %arg1[%c88] : memref<169xf32, #tpu.memory_space<smem>>
    %c89 = arith.constant 89 : index
    %89 = memref.load %arg1[%c89] : memref<169xf32, #tpu.memory_space<smem>>
    %c90 = arith.constant 90 : index
    %90 = memref.load %arg1[%c90] : memref<169xf32, #tpu.memory_space<smem>>
    %c91 = arith.constant 91 : index
    %91 = memref.load %arg1[%c91] : memref<169xf32, #tpu.memory_space<smem>>
    %c92 = arith.constant 92 : index
    %92 = memref.load %arg1[%c92] : memref<169xf32, #tpu.memory_space<smem>>
    %c93 = arith.constant 93 : index
    %93 = memref.load %arg1[%c93] : memref<169xf32, #tpu.memory_space<smem>>
    %c94 = arith.constant 94 : index
    %94 = memref.load %arg1[%c94] : memref<169xf32, #tpu.memory_space<smem>>
    %c95 = arith.constant 95 : index
    %95 = memref.load %arg1[%c95] : memref<169xf32, #tpu.memory_space<smem>>
    %c96 = arith.constant 96 : index
    %96 = memref.load %arg1[%c96] : memref<169xf32, #tpu.memory_space<smem>>
    %c97 = arith.constant 97 : index
    %97 = memref.load %arg1[%c97] : memref<169xf32, #tpu.memory_space<smem>>
    %c98 = arith.constant 98 : index
    %98 = memref.load %arg1[%c98] : memref<169xf32, #tpu.memory_space<smem>>
    %c99 = arith.constant 99 : index
    %99 = memref.load %arg1[%c99] : memref<169xf32, #tpu.memory_space<smem>>
    %c100 = arith.constant 100 : index
    %100 = memref.load %arg1[%c100] : memref<169xf32, #tpu.memory_space<smem>>
    %c101 = arith.constant 101 : index
    %101 = memref.load %arg1[%c101] : memref<169xf32, #tpu.memory_space<smem>>
    %c102 = arith.constant 102 : index
    %102 = memref.load %arg1[%c102] : memref<169xf32, #tpu.memory_space<smem>>
    %c103 = arith.constant 103 : index
    %103 = memref.load %arg1[%c103] : memref<169xf32, #tpu.memory_space<smem>>
    %c104 = arith.constant 104 : index
    %104 = memref.load %arg1[%c104] : memref<169xf32, #tpu.memory_space<smem>>
    %c105 = arith.constant 105 : index
    %105 = memref.load %arg1[%c105] : memref<169xf32, #tpu.memory_space<smem>>
    %c106 = arith.constant 106 : index
    %106 = memref.load %arg1[%c106] : memref<169xf32, #tpu.memory_space<smem>>
    %c107 = arith.constant 107 : index
    %107 = memref.load %arg1[%c107] : memref<169xf32, #tpu.memory_space<smem>>
    %c108 = arith.constant 108 : index
    %108 = memref.load %arg1[%c108] : memref<169xf32, #tpu.memory_space<smem>>
    %c109 = arith.constant 109 : index
    %109 = memref.load %arg1[%c109] : memref<169xf32, #tpu.memory_space<smem>>
    %c110 = arith.constant 110 : index
    %110 = memref.load %arg1[%c110] : memref<169xf32, #tpu.memory_space<smem>>
    %c111 = arith.constant 111 : index
    %111 = memref.load %arg1[%c111] : memref<169xf32, #tpu.memory_space<smem>>
    %c112 = arith.constant 112 : index
    %112 = memref.load %arg1[%c112] : memref<169xf32, #tpu.memory_space<smem>>
    %c113 = arith.constant 113 : index
    %113 = memref.load %arg1[%c113] : memref<169xf32, #tpu.memory_space<smem>>
    %c114 = arith.constant 114 : index
    %114 = memref.load %arg1[%c114] : memref<169xf32, #tpu.memory_space<smem>>
    %c115 = arith.constant 115 : index
    %115 = memref.load %arg1[%c115] : memref<169xf32, #tpu.memory_space<smem>>
    %c116 = arith.constant 116 : index
    %116 = memref.load %arg1[%c116] : memref<169xf32, #tpu.memory_space<smem>>
    %c117 = arith.constant 117 : index
    %117 = memref.load %arg1[%c117] : memref<169xf32, #tpu.memory_space<smem>>
    %c118 = arith.constant 118 : index
    %118 = memref.load %arg1[%c118] : memref<169xf32, #tpu.memory_space<smem>>
    %c119 = arith.constant 119 : index
    %119 = memref.load %arg1[%c119] : memref<169xf32, #tpu.memory_space<smem>>
    %c120 = arith.constant 120 : index
    %120 = memref.load %arg1[%c120] : memref<169xf32, #tpu.memory_space<smem>>
    %c121 = arith.constant 121 : index
    %121 = memref.load %arg1[%c121] : memref<169xf32, #tpu.memory_space<smem>>
    %c122 = arith.constant 122 : index
    %122 = memref.load %arg1[%c122] : memref<169xf32, #tpu.memory_space<smem>>
    %c123 = arith.constant 123 : index
    %123 = memref.load %arg1[%c123] : memref<169xf32, #tpu.memory_space<smem>>
    %c124 = arith.constant 124 : index
    %124 = memref.load %arg1[%c124] : memref<169xf32, #tpu.memory_space<smem>>
    %c125 = arith.constant 125 : index
    %125 = memref.load %arg1[%c125] : memref<169xf32, #tpu.memory_space<smem>>
    %c126 = arith.constant 126 : index
    %126 = memref.load %arg1[%c126] : memref<169xf32, #tpu.memory_space<smem>>
    %c127 = arith.constant 127 : index
    %127 = memref.load %arg1[%c127] : memref<169xf32, #tpu.memory_space<smem>>
    %c128 = arith.constant 128 : index
    %128 = memref.load %arg1[%c128] : memref<169xf32, #tpu.memory_space<smem>>
    %c129 = arith.constant 129 : index
    %129 = memref.load %arg1[%c129] : memref<169xf32, #tpu.memory_space<smem>>
    %c130 = arith.constant 130 : index
    %130 = memref.load %arg1[%c130] : memref<169xf32, #tpu.memory_space<smem>>
    %c131 = arith.constant 131 : index
    %131 = memref.load %arg1[%c131] : memref<169xf32, #tpu.memory_space<smem>>
    %c132 = arith.constant 132 : index
    %132 = memref.load %arg1[%c132] : memref<169xf32, #tpu.memory_space<smem>>
    %c133 = arith.constant 133 : index
    %133 = memref.load %arg1[%c133] : memref<169xf32, #tpu.memory_space<smem>>
    %c134 = arith.constant 134 : index
    %134 = memref.load %arg1[%c134] : memref<169xf32, #tpu.memory_space<smem>>
    %c135 = arith.constant 135 : index
    %135 = memref.load %arg1[%c135] : memref<169xf32, #tpu.memory_space<smem>>
    %c136 = arith.constant 136 : index
    %136 = memref.load %arg1[%c136] : memref<169xf32, #tpu.memory_space<smem>>
    %c137 = arith.constant 137 : index
    %137 = memref.load %arg1[%c137] : memref<169xf32, #tpu.memory_space<smem>>
    %c138 = arith.constant 138 : index
    %138 = memref.load %arg1[%c138] : memref<169xf32, #tpu.memory_space<smem>>
    %c139 = arith.constant 139 : index
    %139 = memref.load %arg1[%c139] : memref<169xf32, #tpu.memory_space<smem>>
    %c140 = arith.constant 140 : index
    %140 = memref.load %arg1[%c140] : memref<169xf32, #tpu.memory_space<smem>>
    %c141 = arith.constant 141 : index
    %141 = memref.load %arg1[%c141] : memref<169xf32, #tpu.memory_space<smem>>
    %c142 = arith.constant 142 : index
    %142 = memref.load %arg1[%c142] : memref<169xf32, #tpu.memory_space<smem>>
    %c143 = arith.constant 143 : index
    %143 = memref.load %arg1[%c143] : memref<169xf32, #tpu.memory_space<smem>>
    %c144 = arith.constant 144 : index
    %144 = memref.load %arg1[%c144] : memref<169xf32, #tpu.memory_space<smem>>
    %c145 = arith.constant 145 : index
    %145 = memref.load %arg1[%c145] : memref<169xf32, #tpu.memory_space<smem>>
    %c146 = arith.constant 146 : index
    %146 = memref.load %arg1[%c146] : memref<169xf32, #tpu.memory_space<smem>>
    %c147 = arith.constant 147 : index
    %147 = memref.load %arg1[%c147] : memref<169xf32, #tpu.memory_space<smem>>
    %c148 = arith.constant 148 : index
    %148 = memref.load %arg1[%c148] : memref<169xf32, #tpu.memory_space<smem>>
    %c149 = arith.constant 149 : index
    %149 = memref.load %arg1[%c149] : memref<169xf32, #tpu.memory_space<smem>>
    %c150 = arith.constant 150 : index
    %150 = memref.load %arg1[%c150] : memref<169xf32, #tpu.memory_space<smem>>
    %c151 = arith.constant 151 : index
    %151 = memref.load %arg1[%c151] : memref<169xf32, #tpu.memory_space<smem>>
    %c152 = arith.constant 152 : index
    %152 = memref.load %arg1[%c152] : memref<169xf32, #tpu.memory_space<smem>>
    %c153 = arith.constant 153 : index
    %153 = memref.load %arg1[%c153] : memref<169xf32, #tpu.memory_space<smem>>
    %c154 = arith.constant 154 : index
    %154 = memref.load %arg1[%c154] : memref<169xf32, #tpu.memory_space<smem>>
    %c155 = arith.constant 155 : index
    %155 = memref.load %arg1[%c155] : memref<169xf32, #tpu.memory_space<smem>>
    %c156 = arith.constant 156 : index
    %156 = memref.load %arg1[%c156] : memref<169xf32, #tpu.memory_space<smem>>
    %c157 = arith.constant 157 : index
    %157 = memref.load %arg1[%c157] : memref<169xf32, #tpu.memory_space<smem>>
    %c158 = arith.constant 158 : index
    %158 = memref.load %arg1[%c158] : memref<169xf32, #tpu.memory_space<smem>>
    %c159 = arith.constant 159 : index
    %159 = memref.load %arg1[%c159] : memref<169xf32, #tpu.memory_space<smem>>
    %c160 = arith.constant 160 : index
    %160 = memref.load %arg1[%c160] : memref<169xf32, #tpu.memory_space<smem>>
    %c161 = arith.constant 161 : index
    %161 = memref.load %arg1[%c161] : memref<169xf32, #tpu.memory_space<smem>>
    %c162 = arith.constant 162 : index
    %162 = memref.load %arg1[%c162] : memref<169xf32, #tpu.memory_space<smem>>
    %c163 = arith.constant 163 : index
    %163 = memref.load %arg1[%c163] : memref<169xf32, #tpu.memory_space<smem>>
    %c164 = arith.constant 164 : index
    %164 = memref.load %arg1[%c164] : memref<169xf32, #tpu.memory_space<smem>>
    %c165 = arith.constant 165 : index
    %165 = memref.load %arg1[%c165] : memref<169xf32, #tpu.memory_space<smem>>
    %c166 = arith.constant 166 : index
    %166 = memref.load %arg1[%c166] : memref<169xf32, #tpu.memory_space<smem>>
    %c167 = arith.constant 167 : index
    %167 = memref.load %arg1[%c167] : memref<169xf32, #tpu.memory_space<smem>>
    %c168 = arith.constant 168 : index
    %168 = memref.load %arg1[%c168] : memref<169xf32, #tpu.memory_space<smem>>
    %c0_i32 = arith.constant 0 : i32
    %c16_i32 = arith.constant 16 : i32
    %169 = arith.muli %c0_i32, %c16_i32 : i32
    %170 = tpu.assume_multiple %169, 16 : i32
    %171 = arith.index_cast %170 : i32 to index
    %c0_0 = arith.constant 0 : index
    %172 = vector.load %arg2[%171, %c0_0] : memref<16x128xf32, #tpu.memory_space<vmem>>, vector<8x128xf32>
    %173 = vector.broadcast %0 : f32 to vector<8x128xf32>
    %174 = arith.mulf %172, %173 : vector<8x128xf32>
    %175 = vector.broadcast %8 : f32 to vector<8x128xf32>
    %176 = arith.addf %174, %175 : vector<8x128xf32>
    %177 = math.tanh %176 : vector<8x128xf32>
    %178 = vector.broadcast %1 : f32 to vector<8x128xf32>
    %179 = arith.mulf %172, %178 : vector<8x128xf32>
    %180 = vector.broadcast %9 : f32 to vector<8x128xf32>
    %181 = arith.addf %179, %180 : vector<8x128xf32>
    %182 = math.tanh %181 : vector<8x128xf32>
    %183 = vector.broadcast %2 : f32 to vector<8x128xf32>
    %184 = arith.mulf %172, %183 : vector<8x128xf32>
    %185 = vector.broadcast %10 : f32 to vector<8x128xf32>
    %186 = arith.addf %184, %185 : vector<8x128xf32>
    %187 = math.tanh %186 : vector<8x128xf32>
    %188 = vector.broadcast %3 : f32 to vector<8x128xf32>
    %189 = arith.mulf %172, %188 : vector<8x128xf32>
    %190 = vector.broadcast %11 : f32 to vector<8x128xf32>
    %191 = arith.addf %189, %190 : vector<8x128xf32>
    %192 = math.tanh %191 : vector<8x128xf32>
    %193 = vector.broadcast %4 : f32 to vector<8x128xf32>
    %194 = arith.mulf %172, %193 : vector<8x128xf32>
    %195 = vector.broadcast %12 : f32 to vector<8x128xf32>
    %196 = arith.addf %194, %195 : vector<8x128xf32>
    %197 = math.tanh %196 : vector<8x128xf32>
    %198 = vector.broadcast %5 : f32 to vector<8x128xf32>
    %199 = arith.mulf %172, %198 : vector<8x128xf32>
    %200 = vector.broadcast %13 : f32 to vector<8x128xf32>
    %201 = arith.addf %199, %200 : vector<8x128xf32>
    %202 = math.tanh %201 : vector<8x128xf32>
    %203 = vector.broadcast %6 : f32 to vector<8x128xf32>
    %204 = arith.mulf %172, %203 : vector<8x128xf32>
    %205 = vector.broadcast %14 : f32 to vector<8x128xf32>
    %206 = arith.addf %204, %205 : vector<8x128xf32>
    %207 = math.tanh %206 : vector<8x128xf32>
    %208 = vector.broadcast %7 : f32 to vector<8x128xf32>
    %209 = arith.mulf %172, %208 : vector<8x128xf32>
    %210 = vector.broadcast %15 : f32 to vector<8x128xf32>
    %211 = arith.addf %209, %210 : vector<8x128xf32>
    %212 = math.tanh %211 : vector<8x128xf32>
    %213 = vector.broadcast %16 : f32 to vector<8x128xf32>
    %214 = arith.mulf %177, %213 : vector<8x128xf32>
    %215 = vector.broadcast %80 : f32 to vector<8x128xf32>
    %216 = arith.addf %214, %215 : vector<8x128xf32>
    %217 = vector.broadcast %24 : f32 to vector<8x128xf32>
    %218 = arith.mulf %182, %217 : vector<8x128xf32>
    %219 = arith.addf %216, %218 : vector<8x128xf32>
    %220 = vector.broadcast %32 : f32 to vector<8x128xf32>
    %221 = arith.mulf %187, %220 : vector<8x128xf32>
    %222 = arith.addf %219, %221 : vector<8x128xf32>
    %223 = vector.broadcast %40 : f32 to vector<8x128xf32>
    %224 = arith.mulf %192, %223 : vector<8x128xf32>
    %225 = arith.addf %222, %224 : vector<8x128xf32>
    %226 = vector.broadcast %48 : f32 to vector<8x128xf32>
    %227 = arith.mulf %197, %226 : vector<8x128xf32>
    %228 = arith.addf %225, %227 : vector<8x128xf32>
    %229 = vector.broadcast %56 : f32 to vector<8x128xf32>
    %230 = arith.mulf %202, %229 : vector<8x128xf32>
    %231 = arith.addf %228, %230 : vector<8x128xf32>
    %232 = vector.broadcast %64 : f32 to vector<8x128xf32>
    %233 = arith.mulf %207, %232 : vector<8x128xf32>
    %234 = arith.addf %231, %233 : vector<8x128xf32>
    %235 = vector.broadcast %72 : f32 to vector<8x128xf32>
    %236 = arith.mulf %212, %235 : vector<8x128xf32>
    %237 = arith.addf %234, %236 : vector<8x128xf32>
    %238 = math.tanh %237 : vector<8x128xf32>
    %239 = vector.broadcast %17 : f32 to vector<8x128xf32>
    %240 = arith.mulf %177, %239 : vector<8x128xf32>
    %241 = vector.broadcast %81 : f32 to vector<8x128xf32>
    %242 = arith.addf %240, %241 : vector<8x128xf32>
    %243 = vector.broadcast %25 : f32 to vector<8x128xf32>
    %244 = arith.mulf %182, %243 : vector<8x128xf32>
    %245 = arith.addf %242, %244 : vector<8x128xf32>
    %246 = vector.broadcast %33 : f32 to vector<8x128xf32>
    %247 = arith.mulf %187, %246 : vector<8x128xf32>
    %248 = arith.addf %245, %247 : vector<8x128xf32>
    %249 = vector.broadcast %41 : f32 to vector<8x128xf32>
    %250 = arith.mulf %192, %249 : vector<8x128xf32>
    %251 = arith.addf %248, %250 : vector<8x128xf32>
    %252 = vector.broadcast %49 : f32 to vector<8x128xf32>
    %253 = arith.mulf %197, %252 : vector<8x128xf32>
    %254 = arith.addf %251, %253 : vector<8x128xf32>
    %255 = vector.broadcast %57 : f32 to vector<8x128xf32>
    %256 = arith.mulf %202, %255 : vector<8x128xf32>
    %257 = arith.addf %254, %256 : vector<8x128xf32>
    %258 = vector.broadcast %65 : f32 to vector<8x128xf32>
    %259 = arith.mulf %207, %258 : vector<8x128xf32>
    %260 = arith.addf %257, %259 : vector<8x128xf32>
    %261 = vector.broadcast %73 : f32 to vector<8x128xf32>
    %262 = arith.mulf %212, %261 : vector<8x128xf32>
    %263 = arith.addf %260, %262 : vector<8x128xf32>
    %264 = math.tanh %263 : vector<8x128xf32>
    %265 = vector.broadcast %18 : f32 to vector<8x128xf32>
    %266 = arith.mulf %177, %265 : vector<8x128xf32>
    %267 = vector.broadcast %82 : f32 to vector<8x128xf32>
    %268 = arith.addf %266, %267 : vector<8x128xf32>
    %269 = vector.broadcast %26 : f32 to vector<8x128xf32>
    %270 = arith.mulf %182, %269 : vector<8x128xf32>
    %271 = arith.addf %268, %270 : vector<8x128xf32>
    %272 = vector.broadcast %34 : f32 to vector<8x128xf32>
    %273 = arith.mulf %187, %272 : vector<8x128xf32>
    %274 = arith.addf %271, %273 : vector<8x128xf32>
    %275 = vector.broadcast %42 : f32 to vector<8x128xf32>
    %276 = arith.mulf %192, %275 : vector<8x128xf32>
    %277 = arith.addf %274, %276 : vector<8x128xf32>
    %278 = vector.broadcast %50 : f32 to vector<8x128xf32>
    %279 = arith.mulf %197, %278 : vector<8x128xf32>
    %280 = arith.addf %277, %279 : vector<8x128xf32>
    %281 = vector.broadcast %58 : f32 to vector<8x128xf32>
    %282 = arith.mulf %202, %281 : vector<8x128xf32>
    %283 = arith.addf %280, %282 : vector<8x128xf32>
    %284 = vector.broadcast %66 : f32 to vector<8x128xf32>
    %285 = arith.mulf %207, %284 : vector<8x128xf32>
    %286 = arith.addf %283, %285 : vector<8x128xf32>
    %287 = vector.broadcast %74 : f32 to vector<8x128xf32>
    %288 = arith.mulf %212, %287 : vector<8x128xf32>
    %289 = arith.addf %286, %288 : vector<8x128xf32>
    %290 = math.tanh %289 : vector<8x128xf32>
    %291 = vector.broadcast %19 : f32 to vector<8x128xf32>
    %292 = arith.mulf %177, %291 : vector<8x128xf32>
    %293 = vector.broadcast %83 : f32 to vector<8x128xf32>
    %294 = arith.addf %292, %293 : vector<8x128xf32>
    %295 = vector.broadcast %27 : f32 to vector<8x128xf32>
    %296 = arith.mulf %182, %295 : vector<8x128xf32>
    %297 = arith.addf %294, %296 : vector<8x128xf32>
    %298 = vector.broadcast %35 : f32 to vector<8x128xf32>
    %299 = arith.mulf %187, %298 : vector<8x128xf32>
    %300 = arith.addf %297, %299 : vector<8x128xf32>
    %301 = vector.broadcast %43 : f32 to vector<8x128xf32>
    %302 = arith.mulf %192, %301 : vector<8x128xf32>
    %303 = arith.addf %300, %302 : vector<8x128xf32>
    %304 = vector.broadcast %51 : f32 to vector<8x128xf32>
    %305 = arith.mulf %197, %304 : vector<8x128xf32>
    %306 = arith.addf %303, %305 : vector<8x128xf32>
    %307 = vector.broadcast %59 : f32 to vector<8x128xf32>
    %308 = arith.mulf %202, %307 : vector<8x128xf32>
    %309 = arith.addf %306, %308 : vector<8x128xf32>
    %310 = vector.broadcast %67 : f32 to vector<8x128xf32>
    %311 = arith.mulf %207, %310 : vector<8x128xf32>
    %312 = arith.addf %309, %311 : vector<8x128xf32>
    %313 = vector.broadcast %75 : f32 to vector<8x128xf32>
    %314 = arith.mulf %212, %313 : vector<8x128xf32>
    %315 = arith.addf %312, %314 : vector<8x128xf32>
    %316 = math.tanh %315 : vector<8x128xf32>
    %317 = vector.broadcast %20 : f32 to vector<8x128xf32>
    %318 = arith.mulf %177, %317 : vector<8x128xf32>
    %319 = vector.broadcast %84 : f32 to vector<8x128xf32>
    %320 = arith.addf %318, %319 : vector<8x128xf32>
    %321 = vector.broadcast %28 : f32 to vector<8x128xf32>
    %322 = arith.mulf %182, %321 : vector<8x128xf32>
    %323 = arith.addf %320, %322 : vector<8x128xf32>
    %324 = vector.broadcast %36 : f32 to vector<8x128xf32>
    %325 = arith.mulf %187, %324 : vector<8x128xf32>
    %326 = arith.addf %323, %325 : vector<8x128xf32>
    %327 = vector.broadcast %44 : f32 to vector<8x128xf32>
    %328 = arith.mulf %192, %327 : vector<8x128xf32>
    %329 = arith.addf %326, %328 : vector<8x128xf32>
    %330 = vector.broadcast %52 : f32 to vector<8x128xf32>
    %331 = arith.mulf %197, %330 : vector<8x128xf32>
    %332 = arith.addf %329, %331 : vector<8x128xf32>
    %333 = vector.broadcast %60 : f32 to vector<8x128xf32>
    %334 = arith.mulf %202, %333 : vector<8x128xf32>
    %335 = arith.addf %332, %334 : vector<8x128xf32>
    %336 = vector.broadcast %68 : f32 to vector<8x128xf32>
    %337 = arith.mulf %207, %336 : vector<8x128xf32>
    %338 = arith.addf %335, %337 : vector<8x128xf32>
    %339 = vector.broadcast %76 : f32 to vector<8x128xf32>
    %340 = arith.mulf %212, %339 : vector<8x128xf32>
    %341 = arith.addf %338, %340 : vector<8x128xf32>
    %342 = math.tanh %341 : vector<8x128xf32>
    %343 = vector.broadcast %21 : f32 to vector<8x128xf32>
    %344 = arith.mulf %177, %343 : vector<8x128xf32>
    %345 = vector.broadcast %85 : f32 to vector<8x128xf32>
    %346 = arith.addf %344, %345 : vector<8x128xf32>
    %347 = vector.broadcast %29 : f32 to vector<8x128xf32>
    %348 = arith.mulf %182, %347 : vector<8x128xf32>
    %349 = arith.addf %346, %348 : vector<8x128xf32>
    %350 = vector.broadcast %37 : f32 to vector<8x128xf32>
    %351 = arith.mulf %187, %350 : vector<8x128xf32>
    %352 = arith.addf %349, %351 : vector<8x128xf32>
    %353 = vector.broadcast %45 : f32 to vector<8x128xf32>
    %354 = arith.mulf %192, %353 : vector<8x128xf32>
    %355 = arith.addf %352, %354 : vector<8x128xf32>
    %356 = vector.broadcast %53 : f32 to vector<8x128xf32>
    %357 = arith.mulf %197, %356 : vector<8x128xf32>
    %358 = arith.addf %355, %357 : vector<8x128xf32>
    %359 = vector.broadcast %61 : f32 to vector<8x128xf32>
    %360 = arith.mulf %202, %359 : vector<8x128xf32>
    %361 = arith.addf %358, %360 : vector<8x128xf32>
    %362 = vector.broadcast %69 : f32 to vector<8x128xf32>
    %363 = arith.mulf %207, %362 : vector<8x128xf32>
    %364 = arith.addf %361, %363 : vector<8x128xf32>
    %365 = vector.broadcast %77 : f32 to vector<8x128xf32>
    %366 = arith.mulf %212, %365 : vector<8x128xf32>
    %367 = arith.addf %364, %366 : vector<8x128xf32>
    %368 = math.tanh %367 : vector<8x128xf32>
    %369 = vector.broadcast %22 : f32 to vector<8x128xf32>
    %370 = arith.mulf %177, %369 : vector<8x128xf32>
    %371 = vector.broadcast %86 : f32 to vector<8x128xf32>
    %372 = arith.addf %370, %371 : vector<8x128xf32>
    %373 = vector.broadcast %30 : f32 to vector<8x128xf32>
    %374 = arith.mulf %182, %373 : vector<8x128xf32>
    %375 = arith.addf %372, %374 : vector<8x128xf32>
    %376 = vector.broadcast %38 : f32 to vector<8x128xf32>
    %377 = arith.mulf %187, %376 : vector<8x128xf32>
    %378 = arith.addf %375, %377 : vector<8x128xf32>
    %379 = vector.broadcast %46 : f32 to vector<8x128xf32>
    %380 = arith.mulf %192, %379 : vector<8x128xf32>
    %381 = arith.addf %378, %380 : vector<8x128xf32>
    %382 = vector.broadcast %54 : f32 to vector<8x128xf32>
    %383 = arith.mulf %197, %382 : vector<8x128xf32>
    %384 = arith.addf %381, %383 : vector<8x128xf32>
    %385 = vector.broadcast %62 : f32 to vector<8x128xf32>
    %386 = arith.mulf %202, %385 : vector<8x128xf32>
    %387 = arith.addf %384, %386 : vector<8x128xf32>
    %388 = vector.broadcast %70 : f32 to vector<8x128xf32>
    %389 = arith.mulf %207, %388 : vector<8x128xf32>
    %390 = arith.addf %387, %389 : vector<8x128xf32>
    %391 = vector.broadcast %78 : f32 to vector<8x128xf32>
    %392 = arith.mulf %212, %391 : vector<8x128xf32>
    %393 = arith.addf %390, %392 : vector<8x128xf32>
    %394 = math.tanh %393 : vector<8x128xf32>
    %395 = vector.broadcast %23 : f32 to vector<8x128xf32>
    %396 = arith.mulf %177, %395 : vector<8x128xf32>
    %397 = vector.broadcast %87 : f32 to vector<8x128xf32>
    %398 = arith.addf %396, %397 : vector<8x128xf32>
    %399 = vector.broadcast %31 : f32 to vector<8x128xf32>
    %400 = arith.mulf %182, %399 : vector<8x128xf32>
    %401 = arith.addf %398, %400 : vector<8x128xf32>
    %402 = vector.broadcast %39 : f32 to vector<8x128xf32>
    %403 = arith.mulf %187, %402 : vector<8x128xf32>
    %404 = arith.addf %401, %403 : vector<8x128xf32>
    %405 = vector.broadcast %47 : f32 to vector<8x128xf32>
    %406 = arith.mulf %192, %405 : vector<8x128xf32>
    %407 = arith.addf %404, %406 : vector<8x128xf32>
    %408 = vector.broadcast %55 : f32 to vector<8x128xf32>
    %409 = arith.mulf %197, %408 : vector<8x128xf32>
    %410 = arith.addf %407, %409 : vector<8x128xf32>
    %411 = vector.broadcast %63 : f32 to vector<8x128xf32>
    %412 = arith.mulf %202, %411 : vector<8x128xf32>
    %413 = arith.addf %410, %412 : vector<8x128xf32>
    %414 = vector.broadcast %71 : f32 to vector<8x128xf32>
    %415 = arith.mulf %207, %414 : vector<8x128xf32>
    %416 = arith.addf %413, %415 : vector<8x128xf32>
    %417 = vector.broadcast %79 : f32 to vector<8x128xf32>
    %418 = arith.mulf %212, %417 : vector<8x128xf32>
    %419 = arith.addf %416, %418 : vector<8x128xf32>
    %420 = math.tanh %419 : vector<8x128xf32>
    %421 = vector.broadcast %88 : f32 to vector<8x128xf32>
    %422 = arith.mulf %238, %421 : vector<8x128xf32>
    %423 = vector.broadcast %152 : f32 to vector<8x128xf32>
    %424 = arith.addf %422, %423 : vector<8x128xf32>
    %425 = vector.broadcast %96 : f32 to vector<8x128xf32>
    %426 = arith.mulf %264, %425 : vector<8x128xf32>
    %427 = arith.addf %424, %426 : vector<8x128xf32>
    %428 = vector.broadcast %104 : f32 to vector<8x128xf32>
    %429 = arith.mulf %290, %428 : vector<8x128xf32>
    %430 = arith.addf %427, %429 : vector<8x128xf32>
    %431 = vector.broadcast %112 : f32 to vector<8x128xf32>
    %432 = arith.mulf %316, %431 : vector<8x128xf32>
    %433 = arith.addf %430, %432 : vector<8x128xf32>
    %434 = vector.broadcast %120 : f32 to vector<8x128xf32>
    %435 = arith.mulf %342, %434 : vector<8x128xf32>
    %436 = arith.addf %433, %435 : vector<8x128xf32>
    %437 = vector.broadcast %128 : f32 to vector<8x128xf32>
    %438 = arith.mulf %368, %437 : vector<8x128xf32>
    %439 = arith.addf %436, %438 : vector<8x128xf32>
    %440 = vector.broadcast %136 : f32 to vector<8x128xf32>
    %441 = arith.mulf %394, %440 : vector<8x128xf32>
    %442 = arith.addf %439, %441 : vector<8x128xf32>
    %443 = vector.broadcast %144 : f32 to vector<8x128xf32>
    %444 = arith.mulf %420, %443 : vector<8x128xf32>
    %445 = arith.addf %442, %444 : vector<8x128xf32>
    %446 = math.tanh %445 : vector<8x128xf32>
    %447 = vector.broadcast %89 : f32 to vector<8x128xf32>
    %448 = arith.mulf %238, %447 : vector<8x128xf32>
    %449 = vector.broadcast %153 : f32 to vector<8x128xf32>
    %450 = arith.addf %448, %449 : vector<8x128xf32>
    %451 = vector.broadcast %97 : f32 to vector<8x128xf32>
    %452 = arith.mulf %264, %451 : vector<8x128xf32>
    %453 = arith.addf %450, %452 : vector<8x128xf32>
    %454 = vector.broadcast %105 : f32 to vector<8x128xf32>
    %455 = arith.mulf %290, %454 : vector<8x128xf32>
    %456 = arith.addf %453, %455 : vector<8x128xf32>
    %457 = vector.broadcast %113 : f32 to vector<8x128xf32>
    %458 = arith.mulf %316, %457 : vector<8x128xf32>
    %459 = arith.addf %456, %458 : vector<8x128xf32>
    %460 = vector.broadcast %121 : f32 to vector<8x128xf32>
    %461 = arith.mulf %342, %460 : vector<8x128xf32>
    %462 = arith.addf %459, %461 : vector<8x128xf32>
    %463 = vector.broadcast %129 : f32 to vector<8x128xf32>
    %464 = arith.mulf %368, %463 : vector<8x128xf32>
    %465 = arith.addf %462, %464 : vector<8x128xf32>
    %466 = vector.broadcast %137 : f32 to vector<8x128xf32>
    %467 = arith.mulf %394, %466 : vector<8x128xf32>
    %468 = arith.addf %465, %467 : vector<8x128xf32>
    %469 = vector.broadcast %145 : f32 to vector<8x128xf32>
    %470 = arith.mulf %420, %469 : vector<8x128xf32>
    %471 = arith.addf %468, %470 : vector<8x128xf32>
    %472 = math.tanh %471 : vector<8x128xf32>
    %473 = vector.broadcast %90 : f32 to vector<8x128xf32>
    %474 = arith.mulf %238, %473 : vector<8x128xf32>
    %475 = vector.broadcast %154 : f32 to vector<8x128xf32>
    %476 = arith.addf %474, %475 : vector<8x128xf32>
    %477 = vector.broadcast %98 : f32 to vector<8x128xf32>
    %478 = arith.mulf %264, %477 : vector<8x128xf32>
    %479 = arith.addf %476, %478 : vector<8x128xf32>
    %480 = vector.broadcast %106 : f32 to vector<8x128xf32>
    %481 = arith.mulf %290, %480 : vector<8x128xf32>
    %482 = arith.addf %479, %481 : vector<8x128xf32>
    %483 = vector.broadcast %114 : f32 to vector<8x128xf32>
    %484 = arith.mulf %316, %483 : vector<8x128xf32>
    %485 = arith.addf %482, %484 : vector<8x128xf32>
    %486 = vector.broadcast %122 : f32 to vector<8x128xf32>
    %487 = arith.mulf %342, %486 : vector<8x128xf32>
    %488 = arith.addf %485, %487 : vector<8x128xf32>
    %489 = vector.broadcast %130 : f32 to vector<8x128xf32>
    %490 = arith.mulf %368, %489 : vector<8x128xf32>
    %491 = arith.addf %488, %490 : vector<8x128xf32>
    %492 = vector.broadcast %138 : f32 to vector<8x128xf32>
    %493 = arith.mulf %394, %492 : vector<8x128xf32>
    %494 = arith.addf %491, %493 : vector<8x128xf32>
    %495 = vector.broadcast %146 : f32 to vector<8x128xf32>
    %496 = arith.mulf %420, %495 : vector<8x128xf32>
    %497 = arith.addf %494, %496 : vector<8x128xf32>
    %498 = math.tanh %497 : vector<8x128xf32>
    %499 = vector.broadcast %91 : f32 to vector<8x128xf32>
    %500 = arith.mulf %238, %499 : vector<8x128xf32>
    %501 = vector.broadcast %155 : f32 to vector<8x128xf32>
    %502 = arith.addf %500, %501 : vector<8x128xf32>
    %503 = vector.broadcast %99 : f32 to vector<8x128xf32>
    %504 = arith.mulf %264, %503 : vector<8x128xf32>
    %505 = arith.addf %502, %504 : vector<8x128xf32>
    %506 = vector.broadcast %107 : f32 to vector<8x128xf32>
    %507 = arith.mulf %290, %506 : vector<8x128xf32>
    %508 = arith.addf %505, %507 : vector<8x128xf32>
    %509 = vector.broadcast %115 : f32 to vector<8x128xf32>
    %510 = arith.mulf %316, %509 : vector<8x128xf32>
    %511 = arith.addf %508, %510 : vector<8x128xf32>
    %512 = vector.broadcast %123 : f32 to vector<8x128xf32>
    %513 = arith.mulf %342, %512 : vector<8x128xf32>
    %514 = arith.addf %511, %513 : vector<8x128xf32>
    %515 = vector.broadcast %131 : f32 to vector<8x128xf32>
    %516 = arith.mulf %368, %515 : vector<8x128xf32>
    %517 = arith.addf %514, %516 : vector<8x128xf32>
    %518 = vector.broadcast %139 : f32 to vector<8x128xf32>
    %519 = arith.mulf %394, %518 : vector<8x128xf32>
    %520 = arith.addf %517, %519 : vector<8x128xf32>
    %521 = vector.broadcast %147 : f32 to vector<8x128xf32>
    %522 = arith.mulf %420, %521 : vector<8x128xf32>
    %523 = arith.addf %520, %522 : vector<8x128xf32>
    %524 = math.tanh %523 : vector<8x128xf32>
    %525 = vector.broadcast %92 : f32 to vector<8x128xf32>
    %526 = arith.mulf %238, %525 : vector<8x128xf32>
    %527 = vector.broadcast %156 : f32 to vector<8x128xf32>
    %528 = arith.addf %526, %527 : vector<8x128xf32>
    %529 = vector.broadcast %100 : f32 to vector<8x128xf32>
    %530 = arith.mulf %264, %529 : vector<8x128xf32>
    %531 = arith.addf %528, %530 : vector<8x128xf32>
    %532 = vector.broadcast %108 : f32 to vector<8x128xf32>
    %533 = arith.mulf %290, %532 : vector<8x128xf32>
    %534 = arith.addf %531, %533 : vector<8x128xf32>
    %535 = vector.broadcast %116 : f32 to vector<8x128xf32>
    %536 = arith.mulf %316, %535 : vector<8x128xf32>
    %537 = arith.addf %534, %536 : vector<8x128xf32>
    %538 = vector.broadcast %124 : f32 to vector<8x128xf32>
    %539 = arith.mulf %342, %538 : vector<8x128xf32>
    %540 = arith.addf %537, %539 : vector<8x128xf32>
    %541 = vector.broadcast %132 : f32 to vector<8x128xf32>
    %542 = arith.mulf %368, %541 : vector<8x128xf32>
    %543 = arith.addf %540, %542 : vector<8x128xf32>
    %544 = vector.broadcast %140 : f32 to vector<8x128xf32>
    %545 = arith.mulf %394, %544 : vector<8x128xf32>
    %546 = arith.addf %543, %545 : vector<8x128xf32>
    %547 = vector.broadcast %148 : f32 to vector<8x128xf32>
    %548 = arith.mulf %420, %547 : vector<8x128xf32>
    %549 = arith.addf %546, %548 : vector<8x128xf32>
    %550 = math.tanh %549 : vector<8x128xf32>
    %551 = vector.broadcast %93 : f32 to vector<8x128xf32>
    %552 = arith.mulf %238, %551 : vector<8x128xf32>
    %553 = vector.broadcast %157 : f32 to vector<8x128xf32>
    %554 = arith.addf %552, %553 : vector<8x128xf32>
    %555 = vector.broadcast %101 : f32 to vector<8x128xf32>
    %556 = arith.mulf %264, %555 : vector<8x128xf32>
    %557 = arith.addf %554, %556 : vector<8x128xf32>
    %558 = vector.broadcast %109 : f32 to vector<8x128xf32>
    %559 = arith.mulf %290, %558 : vector<8x128xf32>
    %560 = arith.addf %557, %559 : vector<8x128xf32>
    %561 = vector.broadcast %117 : f32 to vector<8x128xf32>
    %562 = arith.mulf %316, %561 : vector<8x128xf32>
    %563 = arith.addf %560, %562 : vector<8x128xf32>
    %564 = vector.broadcast %125 : f32 to vector<8x128xf32>
    %565 = arith.mulf %342, %564 : vector<8x128xf32>
    %566 = arith.addf %563, %565 : vector<8x128xf32>
    %567 = vector.broadcast %133 : f32 to vector<8x128xf32>
    %568 = arith.mulf %368, %567 : vector<8x128xf32>
    %569 = arith.addf %566, %568 : vector<8x128xf32>
    %570 = vector.broadcast %141 : f32 to vector<8x128xf32>
    %571 = arith.mulf %394, %570 : vector<8x128xf32>
    %572 = arith.addf %569, %571 : vector<8x128xf32>
    %573 = vector.broadcast %149 : f32 to vector<8x128xf32>
    %574 = arith.mulf %420, %573 : vector<8x128xf32>
    %575 = arith.addf %572, %574 : vector<8x128xf32>
    %576 = math.tanh %575 : vector<8x128xf32>
    %577 = vector.broadcast %94 : f32 to vector<8x128xf32>
    %578 = arith.mulf %238, %577 : vector<8x128xf32>
    %579 = vector.broadcast %158 : f32 to vector<8x128xf32>
    %580 = arith.addf %578, %579 : vector<8x128xf32>
    %581 = vector.broadcast %102 : f32 to vector<8x128xf32>
    %582 = arith.mulf %264, %581 : vector<8x128xf32>
    %583 = arith.addf %580, %582 : vector<8x128xf32>
    %584 = vector.broadcast %110 : f32 to vector<8x128xf32>
    %585 = arith.mulf %290, %584 : vector<8x128xf32>
    %586 = arith.addf %583, %585 : vector<8x128xf32>
    %587 = vector.broadcast %118 : f32 to vector<8x128xf32>
    %588 = arith.mulf %316, %587 : vector<8x128xf32>
    %589 = arith.addf %586, %588 : vector<8x128xf32>
    %590 = vector.broadcast %126 : f32 to vector<8x128xf32>
    %591 = arith.mulf %342, %590 : vector<8x128xf32>
    %592 = arith.addf %589, %591 : vector<8x128xf32>
    %593 = vector.broadcast %134 : f32 to vector<8x128xf32>
    %594 = arith.mulf %368, %593 : vector<8x128xf32>
    %595 = arith.addf %592, %594 : vector<8x128xf32>
    %596 = vector.broadcast %142 : f32 to vector<8x128xf32>
    %597 = arith.mulf %394, %596 : vector<8x128xf32>
    %598 = arith.addf %595, %597 : vector<8x128xf32>
    %599 = vector.broadcast %150 : f32 to vector<8x128xf32>
    %600 = arith.mulf %420, %599 : vector<8x128xf32>
    %601 = arith.addf %598, %600 : vector<8x128xf32>
    %602 = math.tanh %601 : vector<8x128xf32>
    %603 = vector.broadcast %95 : f32 to vector<8x128xf32>
    %604 = arith.mulf %238, %603 : vector<8x128xf32>
    %605 = vector.broadcast %159 : f32 to vector<8x128xf32>
    %606 = arith.addf %604, %605 : vector<8x128xf32>
    %607 = vector.broadcast %103 : f32 to vector<8x128xf32>
    %608 = arith.mulf %264, %607 : vector<8x128xf32>
    %609 = arith.addf %606, %608 : vector<8x128xf32>
    %610 = vector.broadcast %111 : f32 to vector<8x128xf32>
    %611 = arith.mulf %290, %610 : vector<8x128xf32>
    %612 = arith.addf %609, %611 : vector<8x128xf32>
    %613 = vector.broadcast %119 : f32 to vector<8x128xf32>
    %614 = arith.mulf %316, %613 : vector<8x128xf32>
    %615 = arith.addf %612, %614 : vector<8x128xf32>
    %616 = vector.broadcast %127 : f32 to vector<8x128xf32>
    %617 = arith.mulf %342, %616 : vector<8x128xf32>
    %618 = arith.addf %615, %617 : vector<8x128xf32>
    %619 = vector.broadcast %135 : f32 to vector<8x128xf32>
    %620 = arith.mulf %368, %619 : vector<8x128xf32>
    %621 = arith.addf %618, %620 : vector<8x128xf32>
    %622 = vector.broadcast %143 : f32 to vector<8x128xf32>
    %623 = arith.mulf %394, %622 : vector<8x128xf32>
    %624 = arith.addf %621, %623 : vector<8x128xf32>
    %625 = vector.broadcast %151 : f32 to vector<8x128xf32>
    %626 = arith.mulf %420, %625 : vector<8x128xf32>
    %627 = arith.addf %624, %626 : vector<8x128xf32>
    %628 = math.tanh %627 : vector<8x128xf32>
    %629 = vector.broadcast %160 : f32 to vector<8x128xf32>
    %630 = arith.mulf %446, %629 : vector<8x128xf32>
    %631 = vector.broadcast %168 : f32 to vector<8x128xf32>
    %632 = arith.addf %630, %631 : vector<8x128xf32>
    %633 = vector.broadcast %161 : f32 to vector<8x128xf32>
    %634 = arith.mulf %472, %633 : vector<8x128xf32>
    %635 = arith.addf %632, %634 : vector<8x128xf32>
    %636 = vector.broadcast %162 : f32 to vector<8x128xf32>
    %637 = arith.mulf %498, %636 : vector<8x128xf32>
    %638 = arith.addf %635, %637 : vector<8x128xf32>
    %639 = vector.broadcast %163 : f32 to vector<8x128xf32>
    %640 = arith.mulf %524, %639 : vector<8x128xf32>
    %641 = arith.addf %638, %640 : vector<8x128xf32>
    %642 = vector.broadcast %164 : f32 to vector<8x128xf32>
    %643 = arith.mulf %550, %642 : vector<8x128xf32>
    %644 = arith.addf %641, %643 : vector<8x128xf32>
    %645 = vector.broadcast %165 : f32 to vector<8x128xf32>
    %646 = arith.mulf %576, %645 : vector<8x128xf32>
    %647 = arith.addf %644, %646 : vector<8x128xf32>
    %648 = vector.broadcast %166 : f32 to vector<8x128xf32>
    %649 = arith.mulf %602, %648 : vector<8x128xf32>
    %650 = arith.addf %647, %649 : vector<8x128xf32>
    %651 = vector.broadcast %167 : f32 to vector<8x128xf32>
    %652 = arith.mulf %628, %651 : vector<8x128xf32>
    %653 = arith.addf %650, %652 : vector<8x128xf32>
    %654 = math.tanh %653 : vector<8x128xf32>
    %655 = arith.index_cast %170 : i32 to index
    %c0_1 = arith.constant 0 : index
    %656 = vector.load %arg3[%655, %c0_1] : memref<16x128xf32, #tpu.memory_space<vmem>>, vector<8x128xf32>
    tpu.vector_store %arg3[%655, %c0_1], %654 {strides = array<i32>} : memref<16x128xf32, #tpu.memory_space<vmem>>, vector<8x128xf32>,
    %c8_i32 = arith.constant 8 : i32
    %657 = arith.addi %170, %c8_i32 : i32
    %658 = tpu.assume_multiple %657, 8 : i32
    %659 = arith.index_cast %658 : i32 to index
    %c0_2 = arith.constant 0 : index
    %660 = vector.load %arg2[%659, %c0_2] : memref<16x128xf32, #tpu.memory_space<vmem>>, vector<8x128xf32>
    %661 = vector.broadcast %0 : f32 to vector<8x128xf32>
    %662 = arith.mulf %660, %661 : vector<8x128xf32>
    %663 = vector.broadcast %8 : f32 to vector<8x128xf32>
    %664 = arith.addf %662, %663 : vector<8x128xf32>
    %665 = math.tanh %664 : vector<8x128xf32>
    %666 = vector.broadcast %1 : f32 to vector<8x128xf32>
    %667 = arith.mulf %660, %666 : vector<8x128xf32>
    %668 = vector.broadcast %9 : f32 to vector<8x128xf32>
    %669 = arith.addf %667, %668 : vector<8x128xf32>
    %670 = math.tanh %669 : vector<8x128xf32>
    %671 = vector.broadcast %2 : f32 to vector<8x128xf32>
    %672 = arith.mulf %660, %671 : vector<8x128xf32>
    %673 = vector.broadcast %10 : f32 to vector<8x128xf32>
    %674 = arith.addf %672, %673 : vector<8x128xf32>
    %675 = math.tanh %674 : vector<8x128xf32>
    %676 = vector.broadcast %3 : f32 to vector<8x128xf32>
    %677 = arith.mulf %660, %676 : vector<8x128xf32>
    %678 = vector.broadcast %11 : f32 to vector<8x128xf32>
    %679 = arith.addf %677, %678 : vector<8x128xf32>
    %680 = math.tanh %679 : vector<8x128xf32>
    %681 = vector.broadcast %4 : f32 to vector<8x128xf32>
    %682 = arith.mulf %660, %681 : vector<8x128xf32>
    %683 = vector.broadcast %12 : f32 to vector<8x128xf32>
    %684 = arith.addf %682, %683 : vector<8x128xf32>
    %685 = math.tanh %684 : vector<8x128xf32>
    %686 = vector.broadcast %5 : f32 to vector<8x128xf32>
    %687 = arith.mulf %660, %686 : vector<8x128xf32>
    %688 = vector.broadcast %13 : f32 to vector<8x128xf32>
    %689 = arith.addf %687, %688 : vector<8x128xf32>
    %690 = math.tanh %689 : vector<8x128xf32>
    %691 = vector.broadcast %6 : f32 to vector<8x128xf32>
    %692 = arith.mulf %660, %691 : vector<8x128xf32>
    %693 = vector.broadcast %14 : f32 to vector<8x128xf32>
    %694 = arith.addf %692, %693 : vector<8x128xf32>
    %695 = math.tanh %694 : vector<8x128xf32>
    %696 = vector.broadcast %7 : f32 to vector<8x128xf32>
    %697 = arith.mulf %660, %696 : vector<8x128xf32>
    %698 = vector.broadcast %15 : f32 to vector<8x128xf32>
    %699 = arith.addf %697, %698 : vector<8x128xf32>
    %700 = math.tanh %699 : vector<8x128xf32>
    %701 = vector.broadcast %16 : f32 to vector<8x128xf32>
    %702 = arith.mulf %665, %701 : vector<8x128xf32>
    %703 = vector.broadcast %80 : f32 to vector<8x128xf32>
    %704 = arith.addf %702, %703 : vector<8x128xf32>
    %705 = vector.broadcast %24 : f32 to vector<8x128xf32>
    %706 = arith.mulf %670, %705 : vector<8x128xf32>
    %707 = arith.addf %704, %706 : vector<8x128xf32>
    %708 = vector.broadcast %32 : f32 to vector<8x128xf32>
    %709 = arith.mulf %675, %708 : vector<8x128xf32>
    %710 = arith.addf %707, %709 : vector<8x128xf32>
    %711 = vector.broadcast %40 : f32 to vector<8x128xf32>
    %712 = arith.mulf %680, %711 : vector<8x128xf32>
    %713 = arith.addf %710, %712 : vector<8x128xf32>
    %714 = vector.broadcast %48 : f32 to vector<8x128xf32>
    %715 = arith.mulf %685, %714 : vector<8x128xf32>
    %716 = arith.addf %713, %715 : vector<8x128xf32>
    %717 = vector.broadcast %56 : f32 to vector<8x128xf32>
    %718 = arith.mulf %690, %717 : vector<8x128xf32>
    %719 = arith.addf %716, %718 : vector<8x128xf32>
    %720 = vector.broadcast %64 : f32 to vector<8x128xf32>
    %721 = arith.mulf %695, %720 : vector<8x128xf32>
    %722 = arith.addf %719, %721 : vector<8x128xf32>
    %723 = vector.broadcast %72 : f32 to vector<8x128xf32>
    %724 = arith.mulf %700, %723 : vector<8x128xf32>
    %725 = arith.addf %722, %724 : vector<8x128xf32>
    %726 = math.tanh %725 : vector<8x128xf32>
    %727 = vector.broadcast %17 : f32 to vector<8x128xf32>
    %728 = arith.mulf %665, %727 : vector<8x128xf32>
    %729 = vector.broadcast %81 : f32 to vector<8x128xf32>
    %730 = arith.addf %728, %729 : vector<8x128xf32>
    %731 = vector.broadcast %25 : f32 to vector<8x128xf32>
    %732 = arith.mulf %670, %731 : vector<8x128xf32>
    %733 = arith.addf %730, %732 : vector<8x128xf32>
    %734 = vector.broadcast %33 : f32 to vector<8x128xf32>
    %735 = arith.mulf %675, %734 : vector<8x128xf32>
    %736 = arith.addf %733, %735 : vector<8x128xf32>
    %737 = vector.broadcast %41 : f32 to vector<8x128xf32>
    %738 = arith.mulf %680, %737 : vector<8x128xf32>
    %739 = arith.addf %736, %738 : vector<8x128xf32>
    %740 = vector.broadcast %49 : f32 to vector<8x128xf32>
    %741 = arith.mulf %685, %740 : vector<8x128xf32>
    %742 = arith.addf %739, %741 : vector<8x128xf32>
    %743 = vector.broadcast %57 : f32 to vector<8x128xf32>
    %744 = arith.mulf %690, %743 : vector<8x128xf32>
    %745 = arith.addf %742, %744 : vector<8x128xf32>
    %746 = vector.broadcast %65 : f32 to vector<8x128xf32>
    %747 = arith.mulf %695, %746 : vector<8x128xf32>
    %748 = arith.addf %745, %747 : vector<8x128xf32>
    %749 = vector.broadcast %73 : f32 to vector<8x128xf32>
    %750 = arith.mulf %700, %749 : vector<8x128xf32>
    %751 = arith.addf %748, %750 : vector<8x128xf32>
    %752 = math.tanh %751 : vector<8x128xf32>
    %753 = vector.broadcast %18 : f32 to vector<8x128xf32>
    %754 = arith.mulf %665, %753 : vector<8x128xf32>
    %755 = vector.broadcast %82 : f32 to vector<8x128xf32>
    %756 = arith.addf %754, %755 : vector<8x128xf32>
    %757 = vector.broadcast %26 : f32 to vector<8x128xf32>
    %758 = arith.mulf %670, %757 : vector<8x128xf32>
    %759 = arith.addf %756, %758 : vector<8x128xf32>
    %760 = vector.broadcast %34 : f32 to vector<8x128xf32>
    %761 = arith.mulf %675, %760 : vector<8x128xf32>
    %762 = arith.addf %759, %761 : vector<8x128xf32>
    %763 = vector.broadcast %42 : f32 to vector<8x128xf32>
    %764 = arith.mulf %680, %763 : vector<8x128xf32>
    %765 = arith.addf %762, %764 : vector<8x128xf32>
    %766 = vector.broadcast %50 : f32 to vector<8x128xf32>
    %767 = arith.mulf %685, %766 : vector<8x128xf32>
    %768 = arith.addf %765, %767 : vector<8x128xf32>
    %769 = vector.broadcast %58 : f32 to vector<8x128xf32>
    %770 = arith.mulf %690, %769 : vector<8x128xf32>
    %771 = arith.addf %768, %770 : vector<8x128xf32>
    %772 = vector.broadcast %66 : f32 to vector<8x128xf32>
    %773 = arith.mulf %695, %772 : vector<8x128xf32>
    %774 = arith.addf %771, %773 : vector<8x128xf32>
    %775 = vector.broadcast %74 : f32 to vector<8x128xf32>
    %776 = arith.mulf %700, %775 : vector<8x128xf32>
    %777 = arith.addf %774, %776 : vector<8x128xf32>
    %778 = math.tanh %777 : vector<8x128xf32>
    %779 = vector.broadcast %19 : f32 to vector<8x128xf32>
    %780 = arith.mulf %665, %779 : vector<8x128xf32>
    %781 = vector.broadcast %83 : f32 to vector<8x128xf32>
    %782 = arith.addf %780, %781 : vector<8x128xf32>
    %783 = vector.broadcast %27 : f32 to vector<8x128xf32>
    %784 = arith.mulf %670, %783 : vector<8x128xf32>
    %785 = arith.addf %782, %784 : vector<8x128xf32>
    %786 = vector.broadcast %35 : f32 to vector<8x128xf32>
    %787 = arith.mulf %675, %786 : vector<8x128xf32>
    %788 = arith.addf %785, %787 : vector<8x128xf32>
    %789 = vector.broadcast %43 : f32 to vector<8x128xf32>
    %790 = arith.mulf %680, %789 : vector<8x128xf32>
    %791 = arith.addf %788, %790 : vector<8x128xf32>
    %792 = vector.broadcast %51 : f32 to vector<8x128xf32>
    %793 = arith.mulf %685, %792 : vector<8x128xf32>
    %794 = arith.addf %791, %793 : vector<8x128xf32>
    %795 = vector.broadcast %59 : f32 to vector<8x128xf32>
    %796 = arith.mulf %690, %795 : vector<8x128xf32>
    %797 = arith.addf %794, %796 : vector<8x128xf32>
    %798 = vector.broadcast %67 : f32 to vector<8x128xf32>
    %799 = arith.mulf %695, %798 : vector<8x128xf32>
    %800 = arith.addf %797, %799 : vector<8x128xf32>
    %801 = vector.broadcast %75 : f32 to vector<8x128xf32>
    %802 = arith.mulf %700, %801 : vector<8x128xf32>
    %803 = arith.addf %800, %802 : vector<8x128xf32>
    %804 = math.tanh %803 : vector<8x128xf32>
    %805 = vector.broadcast %20 : f32 to vector<8x128xf32>
    %806 = arith.mulf %665, %805 : vector<8x128xf32>
    %807 = vector.broadcast %84 : f32 to vector<8x128xf32>
    %808 = arith.addf %806, %807 : vector<8x128xf32>
    %809 = vector.broadcast %28 : f32 to vector<8x128xf32>
    %810 = arith.mulf %670, %809 : vector<8x128xf32>
    %811 = arith.addf %808, %810 : vector<8x128xf32>
    %812 = vector.broadcast %36 : f32 to vector<8x128xf32>
    %813 = arith.mulf %675, %812 : vector<8x128xf32>
    %814 = arith.addf %811, %813 : vector<8x128xf32>
    %815 = vector.broadcast %44 : f32 to vector<8x128xf32>
    %816 = arith.mulf %680, %815 : vector<8x128xf32>
    %817 = arith.addf %814, %816 : vector<8x128xf32>
    %818 = vector.broadcast %52 : f32 to vector<8x128xf32>
    %819 = arith.mulf %685, %818 : vector<8x128xf32>
    %820 = arith.addf %817, %819 : vector<8x128xf32>
    %821 = vector.broadcast %60 : f32 to vector<8x128xf32>
    %822 = arith.mulf %690, %821 : vector<8x128xf32>
    %823 = arith.addf %820, %822 : vector<8x128xf32>
    %824 = vector.broadcast %68 : f32 to vector<8x128xf32>
    %825 = arith.mulf %695, %824 : vector<8x128xf32>
    %826 = arith.addf %823, %825 : vector<8x128xf32>
    %827 = vector.broadcast %76 : f32 to vector<8x128xf32>
    %828 = arith.mulf %700, %827 : vector<8x128xf32>
    %829 = arith.addf %826, %828 : vector<8x128xf32>
    %830 = math.tanh %829 : vector<8x128xf32>
    %831 = vector.broadcast %21 : f32 to vector<8x128xf32>
    %832 = arith.mulf %665, %831 : vector<8x128xf32>
    %833 = vector.broadcast %85 : f32 to vector<8x128xf32>
    %834 = arith.addf %832, %833 : vector<8x128xf32>
    %835 = vector.broadcast %29 : f32 to vector<8x128xf32>
    %836 = arith.mulf %670, %835 : vector<8x128xf32>
    %837 = arith.addf %834, %836 : vector<8x128xf32>
    %838 = vector.broadcast %37 : f32 to vector<8x128xf32>
    %839 = arith.mulf %675, %838 : vector<8x128xf32>
    %840 = arith.addf %837, %839 : vector<8x128xf32>
    %841 = vector.broadcast %45 : f32 to vector<8x128xf32>
    %842 = arith.mulf %680, %841 : vector<8x128xf32>
    %843 = arith.addf %840, %842 : vector<8x128xf32>
    %844 = vector.broadcast %53 : f32 to vector<8x128xf32>
    %845 = arith.mulf %685, %844 : vector<8x128xf32>
    %846 = arith.addf %843, %845 : vector<8x128xf32>
    %847 = vector.broadcast %61 : f32 to vector<8x128xf32>
    %848 = arith.mulf %690, %847 : vector<8x128xf32>
    %849 = arith.addf %846, %848 : vector<8x128xf32>
    %850 = vector.broadcast %69 : f32 to vector<8x128xf32>
    %851 = arith.mulf %695, %850 : vector<8x128xf32>
    %852 = arith.addf %849, %851 : vector<8x128xf32>
    %853 = vector.broadcast %77 : f32 to vector<8x128xf32>
    %854 = arith.mulf %700, %853 : vector<8x128xf32>
    %855 = arith.addf %852, %854 : vector<8x128xf32>
    %856 = math.tanh %855 : vector<8x128xf32>
    %857 = vector.broadcast %22 : f32 to vector<8x128xf32>
    %858 = arith.mulf %665, %857 : vector<8x128xf32>
    %859 = vector.broadcast %86 : f32 to vector<8x128xf32>
    %860 = arith.addf %858, %859 : vector<8x128xf32>
    %861 = vector.broadcast %30 : f32 to vector<8x128xf32>
    %862 = arith.mulf %670, %861 : vector<8x128xf32>
    %863 = arith.addf %860, %862 : vector<8x128xf32>
    %864 = vector.broadcast %38 : f32 to vector<8x128xf32>
    %865 = arith.mulf %675, %864 : vector<8x128xf32>
    %866 = arith.addf %863, %865 : vector<8x128xf32>
    %867 = vector.broadcast %46 : f32 to vector<8x128xf32>
    %868 = arith.mulf %680, %867 : vector<8x128xf32>
    %869 = arith.addf %866, %868 : vector<8x128xf32>
    %870 = vector.broadcast %54 : f32 to vector<8x128xf32>
    %871 = arith.mulf %685, %870 : vector<8x128xf32>
    %872 = arith.addf %869, %871 : vector<8x128xf32>
    %873 = vector.broadcast %62 : f32 to vector<8x128xf32>
    %874 = arith.mulf %690, %873 : vector<8x128xf32>
    %875 = arith.addf %872, %874 : vector<8x128xf32>
    %876 = vector.broadcast %70 : f32 to vector<8x128xf32>
    %877 = arith.mulf %695, %876 : vector<8x128xf32>
    %878 = arith.addf %875, %877 : vector<8x128xf32>
    %879 = vector.broadcast %78 : f32 to vector<8x128xf32>
    %880 = arith.mulf %700, %879 : vector<8x128xf32>
    %881 = arith.addf %878, %880 : vector<8x128xf32>
    %882 = math.tanh %881 : vector<8x128xf32>
    %883 = vector.broadcast %23 : f32 to vector<8x128xf32>
    %884 = arith.mulf %665, %883 : vector<8x128xf32>
    %885 = vector.broadcast %87 : f32 to vector<8x128xf32>
    %886 = arith.addf %884, %885 : vector<8x128xf32>
    %887 = vector.broadcast %31 : f32 to vector<8x128xf32>
    %888 = arith.mulf %670, %887 : vector<8x128xf32>
    %889 = arith.addf %886, %888 : vector<8x128xf32>
    %890 = vector.broadcast %39 : f32 to vector<8x128xf32>
    %891 = arith.mulf %675, %890 : vector<8x128xf32>
    %892 = arith.addf %889, %891 : vector<8x128xf32>
    %893 = vector.broadcast %47 : f32 to vector<8x128xf32>
    %894 = arith.mulf %680, %893 : vector<8x128xf32>
    %895 = arith.addf %892, %894 : vector<8x128xf32>
    %896 = vector.broadcast %55 : f32 to vector<8x128xf32>
    %897 = arith.mulf %685, %896 : vector<8x128xf32>
    %898 = arith.addf %895, %897 : vector<8x128xf32>
    %899 = vector.broadcast %63 : f32 to vector<8x128xf32>
    %900 = arith.mulf %690, %899 : vector<8x128xf32>
    %901 = arith.addf %898, %900 : vector<8x128xf32>
    %902 = vector.broadcast %71 : f32 to vector<8x128xf32>
    %903 = arith.mulf %695, %902 : vector<8x128xf32>
    %904 = arith.addf %901, %903 : vector<8x128xf32>
    %905 = vector.broadcast %79 : f32 to vector<8x128xf32>
    %906 = arith.mulf %700, %905 : vector<8x128xf32>
    %907 = arith.addf %904, %906 : vector<8x128xf32>
    %908 = math.tanh %907 : vector<8x128xf32>
    %909 = vector.broadcast %88 : f32 to vector<8x128xf32>
    %910 = arith.mulf %726, %909 : vector<8x128xf32>
    %911 = vector.broadcast %152 : f32 to vector<8x128xf32>
    %912 = arith.addf %910, %911 : vector<8x128xf32>
    %913 = vector.broadcast %96 : f32 to vector<8x128xf32>
    %914 = arith.mulf %752, %913 : vector<8x128xf32>
    %915 = arith.addf %912, %914 : vector<8x128xf32>
    %916 = vector.broadcast %104 : f32 to vector<8x128xf32>
    %917 = arith.mulf %778, %916 : vector<8x128xf32>
    %918 = arith.addf %915, %917 : vector<8x128xf32>
    %919 = vector.broadcast %112 : f32 to vector<8x128xf32>
    %920 = arith.mulf %804, %919 : vector<8x128xf32>
    %921 = arith.addf %918, %920 : vector<8x128xf32>
    %922 = vector.broadcast %120 : f32 to vector<8x128xf32>
    %923 = arith.mulf %830, %922 : vector<8x128xf32>
    %924 = arith.addf %921, %923 : vector<8x128xf32>
    %925 = vector.broadcast %128 : f32 to vector<8x128xf32>
    %926 = arith.mulf %856, %925 : vector<8x128xf32>
    %927 = arith.addf %924, %926 : vector<8x128xf32>
    %928 = vector.broadcast %136 : f32 to vector<8x128xf32>
    %929 = arith.mulf %882, %928 : vector<8x128xf32>
    %930 = arith.addf %927, %929 : vector<8x128xf32>
    %931 = vector.broadcast %144 : f32 to vector<8x128xf32>
    %932 = arith.mulf %908, %931 : vector<8x128xf32>
    %933 = arith.addf %930, %932 : vector<8x128xf32>
    %934 = math.tanh %933 : vector<8x128xf32>
    %935 = vector.broadcast %89 : f32 to vector<8x128xf32>
    %936 = arith.mulf %726, %935 : vector<8x128xf32>
    %937 = vector.broadcast %153 : f32 to vector<8x128xf32>
    %938 = arith.addf %936, %937 : vector<8x128xf32>
    %939 = vector.broadcast %97 : f32 to vector<8x128xf32>
    %940 = arith.mulf %752, %939 : vector<8x128xf32>
    %941 = arith.addf %938, %940 : vector<8x128xf32>
    %942 = vector.broadcast %105 : f32 to vector<8x128xf32>
    %943 = arith.mulf %778, %942 : vector<8x128xf32>
    %944 = arith.addf %941, %943 : vector<8x128xf32>
    %945 = vector.broadcast %113 : f32 to vector<8x128xf32>
    %946 = arith.mulf %804, %945 : vector<8x128xf32>
    %947 = arith.addf %944, %946 : vector<8x128xf32>
    %948 = vector.broadcast %121 : f32 to vector<8x128xf32>
    %949 = arith.mulf %830, %948 : vector<8x128xf32>
    %950 = arith.addf %947, %949 : vector<8x128xf32>
    %951 = vector.broadcast %129 : f32 to vector<8x128xf32>
    %952 = arith.mulf %856, %951 : vector<8x128xf32>
    %953 = arith.addf %950, %952 : vector<8x128xf32>
    %954 = vector.broadcast %137 : f32 to vector<8x128xf32>
    %955 = arith.mulf %882, %954 : vector<8x128xf32>
    %956 = arith.addf %953, %955 : vector<8x128xf32>
    %957 = vector.broadcast %145 : f32 to vector<8x128xf32>
    %958 = arith.mulf %908, %957 : vector<8x128xf32>
    %959 = arith.addf %956, %958 : vector<8x128xf32>
    %960 = math.tanh %959 : vector<8x128xf32>
    %961 = vector.broadcast %90 : f32 to vector<8x128xf32>
    %962 = arith.mulf %726, %961 : vector<8x128xf32>
    %963 = vector.broadcast %154 : f32 to vector<8x128xf32>
    %964 = arith.addf %962, %963 : vector<8x128xf32>
    %965 = vector.broadcast %98 : f32 to vector<8x128xf32>
    %966 = arith.mulf %752, %965 : vector<8x128xf32>
    %967 = arith.addf %964, %966 : vector<8x128xf32>
    %968 = vector.broadcast %106 : f32 to vector<8x128xf32>
    %969 = arith.mulf %778, %968 : vector<8x128xf32>
    %970 = arith.addf %967, %969 : vector<8x128xf32>
    %971 = vector.broadcast %114 : f32 to vector<8x128xf32>
    %972 = arith.mulf %804, %971 : vector<8x128xf32>
    %973 = arith.addf %970, %972 : vector<8x128xf32>
    %974 = vector.broadcast %122 : f32 to vector<8x128xf32>
    %975 = arith.mulf %830, %974 : vector<8x128xf32>
    %976 = arith.addf %973, %975 : vector<8x128xf32>
    %977 = vector.broadcast %130 : f32 to vector<8x128xf32>
    %978 = arith.mulf %856, %977 : vector<8x128xf32>
    %979 = arith.addf %976, %978 : vector<8x128xf32>
    %980 = vector.broadcast %138 : f32 to vector<8x128xf32>
    %981 = arith.mulf %882, %980 : vector<8x128xf32>
    %982 = arith.addf %979, %981 : vector<8x128xf32>
    %983 = vector.broadcast %146 : f32 to vector<8x128xf32>
    %984 = arith.mulf %908, %983 : vector<8x128xf32>
    %985 = arith.addf %982, %984 : vector<8x128xf32>
    %986 = math.tanh %985 : vector<8x128xf32>
    %987 = vector.broadcast %91 : f32 to vector<8x128xf32>
    %988 = arith.mulf %726, %987 : vector<8x128xf32>
    %989 = vector.broadcast %155 : f32 to vector<8x128xf32>
    %990 = arith.addf %988, %989 : vector<8x128xf32>
    %991 = vector.broadcast %99 : f32 to vector<8x128xf32>
    %992 = arith.mulf %752, %991 : vector<8x128xf32>
    %993 = arith.addf %990, %992 : vector<8x128xf32>
    %994 = vector.broadcast %107 : f32 to vector<8x128xf32>
    %995 = arith.mulf %778, %994 : vector<8x128xf32>
    %996 = arith.addf %993, %995 : vector<8x128xf32>
    %997 = vector.broadcast %115 : f32 to vector<8x128xf32>
    %998 = arith.mulf %804, %997 : vector<8x128xf32>
    %999 = arith.addf %996, %998 : vector<8x128xf32>
    %1000 = vector.broadcast %123 : f32 to vector<8x128xf32>
    %1001 = arith.mulf %830, %1000 : vector<8x128xf32>
    %1002 = arith.addf %999, %1001 : vector<8x128xf32>
    %1003 = vector.broadcast %131 : f32 to vector<8x128xf32>
    %1004 = arith.mulf %856, %1003 : vector<8x128xf32>
    %1005 = arith.addf %1002, %1004 : vector<8x128xf32>
    %1006 = vector.broadcast %139 : f32 to vector<8x128xf32>
    %1007 = arith.mulf %882, %1006 : vector<8x128xf32>
    %1008 = arith.addf %1005, %1007 : vector<8x128xf32>
    %1009 = vector.broadcast %147 : f32 to vector<8x128xf32>
    %1010 = arith.mulf %908, %1009 : vector<8x128xf32>
    %1011 = arith.addf %1008, %1010 : vector<8x128xf32>
    %1012 = math.tanh %1011 : vector<8x128xf32>
    %1013 = vector.broadcast %92 : f32 to vector<8x128xf32>
    %1014 = arith.mulf %726, %1013 : vector<8x128xf32>
    %1015 = vector.broadcast %156 : f32 to vector<8x128xf32>
    %1016 = arith.addf %1014, %1015 : vector<8x128xf32>
    %1017 = vector.broadcast %100 : f32 to vector<8x128xf32>
    %1018 = arith.mulf %752, %1017 : vector<8x128xf32>
    %1019 = arith.addf %1016, %1018 : vector<8x128xf32>
    %1020 = vector.broadcast %108 : f32 to vector<8x128xf32>
    %1021 = arith.mulf %778, %1020 : vector<8x128xf32>
    %1022 = arith.addf %1019, %1021 : vector<8x128xf32>
    %1023 = vector.broadcast %116 : f32 to vector<8x128xf32>
    %1024 = arith.mulf %804, %1023 : vector<8x128xf32>
    %1025 = arith.addf %1022, %1024 : vector<8x128xf32>
    %1026 = vector.broadcast %124 : f32 to vector<8x128xf32>
    %1027 = arith.mulf %830, %1026 : vector<8x128xf32>
    %1028 = arith.addf %1025, %1027 : vector<8x128xf32>
    %1029 = vector.broadcast %132 : f32 to vector<8x128xf32>
    %1030 = arith.mulf %856, %1029 : vector<8x128xf32>
    %1031 = arith.addf %1028, %1030 : vector<8x128xf32>
    %1032 = vector.broadcast %140 : f32 to vector<8x128xf32>
    %1033 = arith.mulf %882, %1032 : vector<8x128xf32>
    %1034 = arith.addf %1031, %1033 : vector<8x128xf32>
    %1035 = vector.broadcast %148 : f32 to vector<8x128xf32>
    %1036 = arith.mulf %908, %1035 : vector<8x128xf32>
    %1037 = arith.addf %1034, %1036 : vector<8x128xf32>
    %1038 = math.tanh %1037 : vector<8x128xf32>
    %1039 = vector.broadcast %93 : f32 to vector<8x128xf32>
    %1040 = arith.mulf %726, %1039 : vector<8x128xf32>
    %1041 = vector.broadcast %157 : f32 to vector<8x128xf32>
    %1042 = arith.addf %1040, %1041 : vector<8x128xf32>
    %1043 = vector.broadcast %101 : f32 to vector<8x128xf32>
    %1044 = arith.mulf %752, %1043 : vector<8x128xf32>
    %1045 = arith.addf %1042, %1044 : vector<8x128xf32>
    %1046 = vector.broadcast %109 : f32 to vector<8x128xf32>
    %1047 = arith.mulf %778, %1046 : vector<8x128xf32>
    %1048 = arith.addf %1045, %1047 : vector<8x128xf32>
    %1049 = vector.broadcast %117 : f32 to vector<8x128xf32>
    %1050 = arith.mulf %804, %1049 : vector<8x128xf32>
    %1051 = arith.addf %1048, %1050 : vector<8x128xf32>
    %1052 = vector.broadcast %125 : f32 to vector<8x128xf32>
    %1053 = arith.mulf %830, %1052 : vector<8x128xf32>
    %1054 = arith.addf %1051, %1053 : vector<8x128xf32>
    %1055 = vector.broadcast %133 : f32 to vector<8x128xf32>
    %1056 = arith.mulf %856, %1055 : vector<8x128xf32>
    %1057 = arith.addf %1054, %1056 : vector<8x128xf32>
    %1058 = vector.broadcast %141 : f32 to vector<8x128xf32>
    %1059 = arith.mulf %882, %1058 : vector<8x128xf32>
    %1060 = arith.addf %1057, %1059 : vector<8x128xf32>
    %1061 = vector.broadcast %149 : f32 to vector<8x128xf32>
    %1062 = arith.mulf %908, %1061 : vector<8x128xf32>
    %1063 = arith.addf %1060, %1062 : vector<8x128xf32>
    %1064 = math.tanh %1063 : vector<8x128xf32>
    %1065 = vector.broadcast %94 : f32 to vector<8x128xf32>
    %1066 = arith.mulf %726, %1065 : vector<8x128xf32>
    %1067 = vector.broadcast %158 : f32 to vector<8x128xf32>
    %1068 = arith.addf %1066, %1067 : vector<8x128xf32>
    %1069 = vector.broadcast %102 : f32 to vector<8x128xf32>
    %1070 = arith.mulf %752, %1069 : vector<8x128xf32>
    %1071 = arith.addf %1068, %1070 : vector<8x128xf32>
    %1072 = vector.broadcast %110 : f32 to vector<8x128xf32>
    %1073 = arith.mulf %778, %1072 : vector<8x128xf32>
    %1074 = arith.addf %1071, %1073 : vector<8x128xf32>
    %1075 = vector.broadcast %118 : f32 to vector<8x128xf32>
    %1076 = arith.mulf %804, %1075 : vector<8x128xf32>
    %1077 = arith.addf %1074, %1076 : vector<8x128xf32>
    %1078 = vector.broadcast %126 : f32 to vector<8x128xf32>
    %1079 = arith.mulf %830, %1078 : vector<8x128xf32>
    %1080 = arith.addf %1077, %1079 : vector<8x128xf32>
    %1081 = vector.broadcast %134 : f32 to vector<8x128xf32>
    %1082 = arith.mulf %856, %1081 : vector<8x128xf32>
    %1083 = arith.addf %1080, %1082 : vector<8x128xf32>
    %1084 = vector.broadcast %142 : f32 to vector<8x128xf32>
    %1085 = arith.mulf %882, %1084 : vector<8x128xf32>
    %1086 = arith.addf %1083, %1085 : vector<8x128xf32>
    %1087 = vector.broadcast %150 : f32 to vector<8x128xf32>
    %1088 = arith.mulf %908, %1087 : vector<8x128xf32>
    %1089 = arith.addf %1086, %1088 : vector<8x128xf32>
    %1090 = math.tanh %1089 : vector<8x128xf32>
    %1091 = vector.broadcast %95 : f32 to vector<8x128xf32>
    %1092 = arith.mulf %726, %1091 : vector<8x128xf32>
    %1093 = vector.broadcast %159 : f32 to vector<8x128xf32>
    %1094 = arith.addf %1092, %1093 : vector<8x128xf32>
    %1095 = vector.broadcast %103 : f32 to vector<8x128xf32>
    %1096 = arith.mulf %752, %1095 : vector<8x128xf32>
    %1097 = arith.addf %1094, %1096 : vector<8x128xf32>
    %1098 = vector.broadcast %111 : f32 to vector<8x128xf32>
    %1099 = arith.mulf %778, %1098 : vector<8x128xf32>
    %1100 = arith.addf %1097, %1099 : vector<8x128xf32>
    %1101 = vector.broadcast %119 : f32 to vector<8x128xf32>
    %1102 = arith.mulf %804, %1101 : vector<8x128xf32>
    %1103 = arith.addf %1100, %1102 : vector<8x128xf32>
    %1104 = vector.broadcast %127 : f32 to vector<8x128xf32>
    %1105 = arith.mulf %830, %1104 : vector<8x128xf32>
    %1106 = arith.addf %1103, %1105 : vector<8x128xf32>
    %1107 = vector.broadcast %135 : f32 to vector<8x128xf32>
    %1108 = arith.mulf %856, %1107 : vector<8x128xf32>
    %1109 = arith.addf %1106, %1108 : vector<8x128xf32>
    %1110 = vector.broadcast %143 : f32 to vector<8x128xf32>
    %1111 = arith.mulf %882, %1110 : vector<8x128xf32>
    %1112 = arith.addf %1109, %1111 : vector<8x128xf32>
    %1113 = vector.broadcast %151 : f32 to vector<8x128xf32>
    %1114 = arith.mulf %908, %1113 : vector<8x128xf32>
    %1115 = arith.addf %1112, %1114 : vector<8x128xf32>
    %1116 = math.tanh %1115 : vector<8x128xf32>
    %1117 = vector.broadcast %160 : f32 to vector<8x128xf32>
    %1118 = arith.mulf %934, %1117 : vector<8x128xf32>
    %1119 = vector.broadcast %168 : f32 to vector<8x128xf32>
    %1120 = arith.addf %1118, %1119 : vector<8x128xf32>
    %1121 = vector.broadcast %161 : f32 to vector<8x128xf32>
    %1122 = arith.mulf %960, %1121 : vector<8x128xf32>
    %1123 = arith.addf %1120, %1122 : vector<8x128xf32>
    %1124 = vector.broadcast %162 : f32 to vector<8x128xf32>
    %1125 = arith.mulf %986, %1124 : vector<8x128xf32>
    %1126 = arith.addf %1123, %1125 : vector<8x128xf32>
    %1127 = vector.broadcast %163 : f32 to vector<8x128xf32>
    %1128 = arith.mulf %1012, %1127 : vector<8x128xf32>
    %1129 = arith.addf %1126, %1128 : vector<8x128xf32>
    %1130 = vector.broadcast %164 : f32 to vector<8x128xf32>
    %1131 = arith.mulf %1038, %1130 : vector<8x128xf32>
    %1132 = arith.addf %1129, %1131 : vector<8x128xf32>
    %1133 = vector.broadcast %165 : f32 to vector<8x128xf32>
    %1134 = arith.mulf %1064, %1133 : vector<8x128xf32>
    %1135 = arith.addf %1132, %1134 : vector<8x128xf32>
    %1136 = vector.broadcast %166 : f32 to vector<8x128xf32>
    %1137 = arith.mulf %1090, %1136 : vector<8x128xf32>
    %1138 = arith.addf %1135, %1137 : vector<8x128xf32>
    %1139 = vector.broadcast %167 : f32 to vector<8x128xf32>
    %1140 = arith.mulf %1116, %1139 : vector<8x128xf32>
    %1141 = arith.addf %1138, %1140 : vector<8x128xf32>
    %1142 = math.tanh %1141 : vector<8x128xf32>
    %1143 = arith.index_cast %658 : i32 to index
    %c0_3 = arith.constant 0 : index
    %1144 = vector.load %arg3[%1143, %c0_3] : memref<16x128xf32, #tpu.memory_space<vmem>>, vector<8x128xf32>
    tpu.vector_store %arg3[%1143, %c0_3], %1142 {strides = array<i32>} : memref<16x128xf32, #tpu.memory_space<vmem>>, vector<8x128xf32>,
    %c1_i32 = arith.constant 1 : i32
    return
  }
  func.func @transform_0(%arg0: i32, %arg1: memref<169xf32, #tpu.memory_space<smem>>) -> (i32, i32) {
    %c0_i32 = arith.constant 0 : i32
    %c0_i32_0 = arith.constant 0 : i32
    return %arg0, %c0_i32 : i32, i32
  }
  func.func @transform_1(%arg0: i32, %arg1: memref<169xf32, #tpu.memory_space<smem>>) -> (i32, i32) {
    %c0_i32 = arith.constant 0 : i32
    %c0_i32_0 = arith.constant 0 : i32
    return %arg0, %c0_i32 : i32, i32
  }
}

</mosaic_0001>

<llo_original>
// kernel: tpu_custom_call.1
$region0: #{tpu_custom_call.1}
  #allocation0 [shape = 'u32[]', space=smem, size = 0x4, offset = 0x4, fixed_abs, tag = 'smem constant byte address 0x4 - core index']
  #allocation1 [shape = 'u32[144,128]{1,0:T(1,128)}', space=vmem, size = 0x12000, scoped, tag = 'internal scratch']
  #allocation2 [shape = 's32[1]{0}', space=sflag, size = 0x4, scoped, tag = 'scoped memory for tpu_custom_call.1']
  #allocation3 [shape = 'u8[1024]{0}', space=smem, size = 0x400, scoped, tag = 'prefetched SMEM operand 0']
  %s0 = inlined_call_operand.hbm [shape: f32[169], index: 0, kind: input, shape index: {}]
  %s1 = inlined_call_operand.hbm [shape: f32[16,128], index: 1, kind: input, shape index: {}]
  %s2 = inlined_call_operand.hbm [shape: f32[16,128], index: 2, kind: output, shape index: {}]
  %s3 = sld [smem:[#allocation0]]
  $region18: #{tpu_custom_call.1} parent=0
    _
  %s5 = ssub.s32 1, %s3
  %s6 = scalar_select 0, %s5, %s3
  %8 = dma.hbm_to_smem %s0, 32, [#allocation3], [#allocation2]
  %9 = dma.done [#allocation2], 32
  %10 = sfence
  $region1: #{tpu_custom_call.1} parent=0
    #allocation4 [shape = 'u8[8192]{0}', space=vmem, size = 0x2000, scoped, tag = 'input window, operand 1, single buffered']
    #allocation5 [shape = 's32[1]{0}', space=sflag, size = 0x4, scoped, tag = 'scoped memory for tpu_custom_call.1']
    #allocation6 [shape = 's32[1]{0}', space=sflag, size = 0x4, scoped, tag = 'scoped memory for tpu_custom_call.1']
    #allocation7 [shape = 'u8[8192]{0}', space=vmem, size = 0x2000, scoped, tag = 'output window, operand 0, single buffered']
    %11 = vsyncpa [#allocation5], 0
    %12 = vsyncpa [#allocation6], 0
    // Predicated region
    $region2: #{tpu_custom_call.1} parent=1 // pred_check
      _
    $region3: #{tpu_custom_call.1} parent=1 // pred_check_branch
      %14 = sbr.rel (0) target = $region5
    $region4: #{tpu_custom_call.1} parent=1 // pred_region
      %s16 = ssub.s32 256, 256
      %17 = vsyncadd [#allocation5], %s16
      %s18 = sshll.u32 [#allocation4], 4
      %s19 = int_to_ptr.vmem [resolvable:$true] %s18
      %24 = dma.hbm_to_vmem [thread:$0]  %s1, 256, %s19, [#allocation5], 128, 128, 8
    $region5: #{tpu_custom_call.1} parent=1 // pred_fallthru
      _
    // Predicated region
    $region6: #{tpu_custom_call.1} parent=1 // pred_check
      _
    $region7: #{tpu_custom_call.1} parent=1 // pred_check_branch
      %26 = sbr.rel (0) target = $region9
    $region8: #{tpu_custom_call.1} parent=1 // pred_region
      %27 = dma.done [#allocation5], 256
    $region9: #{tpu_custom_call.1} parent=1 // pred_fallthru
      _
    %s28 = sld [smem:[#allocation3]]
    %s29 = sld [smem:[#allocation3 + $0x1]]
    %s30 = sld [smem:[#allocation3 + $0x2]]
    %s31 = sld [smem:[#allocation3 + $0x3]]
    %s32 = sld [smem:[#allocation3 + $0x4]]
    %s33 = sld [smem:[#allocation3 + $0x5]]
    %s34 = sld [smem:[#allocation3 + $0x6]]
    %s35 = sld [smem:[#allocation3 + $0x7]]
    %s36 = sld [smem:[#allocation3 + $0x8]]
    %s37 = sld [smem:[#allocation3 + $0x9]]
    %s38 = sld [smem:[#allocation3 + $0xa]]
    %s39 = sld [smem:[#allocation3 + $0xb]]
    %s40 = sld [smem:[#allocation3 + $0xc]]
    %s41 = sld [smem:[#allocation3 + $0xd]]
    %s42 = sld [smem:[#allocation3 + $0xe]]
    %s43 = sld [smem:[#allocation3 + $0xf]]
    %s44 = sld [smem:[#allocation3 + $0x10]]
    %s45 = sld [smem:[#allocation3 + $0x11]]
    %s46 = sld [smem:[#allocation3 + $0x12]]
    %s47 = sld [smem:[#allocation3 + $0x13]]
    %s48 = sld [smem:[#allocation3 + $0x14]]
    %s49 = sld [smem:[#allocation3 + $0x15]]
    %s50 = sld [smem:[#allocation3 + $0x16]]
    %s51 = sld [smem:[#allocation3 + $0x17]]
    %s52 = sld [smem:[#allocation3 + $0x18]]
    %s53 = sld [smem:[#allocation3 + $0x19]]
    %s54 = sld [smem:[#allocation3 + $0x1a]]
    %s55 = sld [smem:[#allocation3 + $0x1b]]
    %s56 = sld [smem:[#allocation3 + $0x1c]]
    %s57 = sld [smem:[#allocation3 + $0x1d]]
    %s58 = sld [smem:[#allocation3 + $0x1e]]
    %s59 = sld [smem:[#allocation3 + $0x1f]]
    %s60 = sld [smem:[#allocation3 + $0x20]]
    %s61 = sld [smem:[#allocation3 + $0x21]]
    %s62 = sld [smem:[#allocation3 + $0x22]]
    %s63 = sld [smem:[#allocation3 + $0x23]]
    %s64 = sld [smem:[#allocation3 + $0x24]]
    %s65 = sld [smem:[#allocation3 + $0x25]]
    %s66 = sld [smem:[#allocation3 + $0x26]]
    %s67 = sld [smem:[#allocation3 + $0x27]]
    %s68 = sld [smem:[#allocation3 + $0x28]]
    %s69 = sld [smem:[#allocation3 + $0x29]]
    %s70 = sld [smem:[#allocation3 + $0x2a]]
    %s71 = sld [smem:[#allocation3 + $0x2b]]
    %s72 = sld [smem:[#allocation3 + $0x2c]]
    %s73 = sld [smem:[#allocation3 + $0x2d]]
    %s74 = sld [smem:[#allocation3 + $0x2e]]
    %s75 = sld [smem:[#allocation3 + $0x2f]]
    %s76 = sld [smem:[#allocation3 + $0x30]]
    %s77 = sld [smem:[#allocation3 + $0x31]]
    %s78 = sld [smem:[#allocation3 + $0x32]]
    %s79 = sld [smem:[#allocation3 + $0x33]]
    %s80 = sld [smem:[#allocation3 + $0x34]]
    %s81 = sld [smem:[#allocation3 + $0x35]]
    %s82 = sld [smem:[#allocation3 + $0x36]]
    %s83 = sld [smem:[#allocation3 + $0x37]]
    %s84 = sld [smem:[#allocation3 + $0x38]]
    %s85 = sld [smem:[#allocation3 + $0x39]]
    %s86 = sld [smem:[#allocation3 + $0x3a]]
    %s87 = sld [smem:[#allocation3 + $0x3b]]
    %s88 = sld [smem:[#allocation3 + $0x3c]]
    %s89 = sld [smem:[#allocation3 + $0x3d]]
    %s90 = sld [smem:[#allocation3 + $0x3e]]
    %s91 = sld [smem:[#allocation3 + $0x3f]]
    %s92 = sld [smem:[#allocation3 + $0x40]]
    %s93 = sld [smem:[#allocation3 + $0x41]]
    %s94 = sld [smem:[#allocation3 + $0x42]]
    %s95 = sld [smem:[#allocation3 + $0x43]]
    %s96 = sld [smem:[#allocation3 + $0x44]]
    %s97 = sld [smem:[#allocation3 + $0x45]]
    %s98 = sld [smem:[#allocation3 + $0x46]]
    %s99 = sld [smem:[#allocation3 + $0x47]]
    %s100 = sld [smem:[#allocation3 + $0x48]]
    %s101 = sld [smem:[#allocation3 + $0x49]]
    %s102 = sld [smem:[#allocation3 + $0x4a]]
    %s103 = sld [smem:[#allocation3 + $0x4b]]
    %s104 = sld [smem:[#allocation3 + $0x4c]]
    %s105 = sld [smem:[#allocation3 + $0x4d]]
    %s106 = sld [smem:[#allocation3 + $0x4e]]
    %s107 = sld [smem:[#allocation3 + $0x4f]]
    %s108 = sld [smem:[#allocation3 + $0x50]]
    %s109 = sld [smem:[#allocation3 + $0x51]]
    %s110 = sld [smem:[#allocation3 + $0x52]]
    %s111 = sld [smem:[#allocation3 + $0x53]]
    %s112 = sld [smem:[#allocation3 + $0x54]]
    %s113 = sld [smem:[#allocation3 + $0x55]]
    %s114 = sld [smem:[#allocation3 + $0x56]]
    %s115 = sld [smem:[#allocation3 + $0x57]]
    %s116 = sld [smem:[#allocation3 + $0x58]]
    %s117 = sld [smem:[#allocation3 + $0x59]]
    %s118 = sld [smem:[#allocation3 + $0x5a]]
    %s119 = sld [smem:[#allocation3 + $0x5b]]
    %s120 = sld [smem:[#allocation3 + $0x5c]]
    %s121 = sld [smem:[#allocation3 + $0x5d]]
    %s122 = sld [smem:[#allocation3 + $0x5e]]
    %s123 = sld [smem:[#allocation3 + $0x5f]]
    %s124 = sld [smem:[#allocation3 + $0x60]]
    %s125 = sld [smem:[#allocation3 + $0x61]]
    %s126 = sld [smem:[#allocation3 + $0x62]]
    %s127 = sld [smem:[#allocation3 + $0x63]]
    %s128 = sld [smem:[#allocation3 + $0x64]]
    %s129 = sld [smem:[#allocation3 + $0x65]]
    %s130 = sld [smem:[#allocation3 + $0x66]]
    %s131 = sld [smem:[#allocation3 + $0x67]]
    %s132 = sld [smem:[#allocation3 + $0x68]]
    %s133 = sld [smem:[#allocation3 + $0x69]]
    %s134 = sld [smem:[#allocation3 + $0x6a]]
    %s135 = sld [smem:[#allocation3 + $0x6b]]
    %s136 = sld [smem:[#allocation3 + $0x6c]]
    %s137 = sld [smem:[#allocation3 + $0x6d]]
    %s138 = sld [smem:[#allocation3 + $0x6e]]
    %s139 = sld [smem:[#allocation3 + $0x6f]]
    %s140 = sld [smem:[#allocation3 + $0x70]]
    %s141 = sld [smem:[#allocation3 + $0x71]]
    %s142 = sld [smem:[#allocation3 + $0x72]]
    %s143 = sld [smem:[#allocation3 + $0x73]]
    %s144 = sld [smem:[#allocation3 + $0x74]]
    %s145 = sld [smem:[#allocation3 + $0x75]]
    %s146 = sld [smem:[#allocation3 + $0x76]]
    %s147 = sld [smem:[#allocation3 + $0x77]]
    %s148 = sld [smem:[#allocation3 + $0x78]]
    %s149 = sld [smem:[#allocation3 + $0x79]]
    %s150 = sld [smem:[#allocation3 + $0x7a]]
    %s151 = sld [smem:[#allocation3 + $0x7b]]
    %s152 = sld [smem:[#allocation3 + $0x7c]]
    %s153 = sld [smem:[#allocation3 + $0x7d]]
    %s154 = sld [smem:[#allocation3 + $0x7e]]
    %s155 = sld [smem:[#allocation3 + $0x7f]]
    %s156 = sld [smem:[#allocation3 + $0x80]]
    %s157 = sld [smem:[#allocation3 + $0x81]]
    %s158 = sld [smem:[#allocation3 + $0x82]]
    %s159 = sld [smem:[#allocation3 + $0x83]]
    %s160 = sld [smem:[#allocation3 + $0x84]]
    %s161 = sld [smem:[#allocation3 + $0x85]]
    %s162 = sld [smem:[#allocation3 + $0x86]]
    %s163 = sld [smem:[#allocation3 + $0x87]]
    %s164 = sld [smem:[#allocation3 + $0x88]]
    %s165 = sld [smem:[#allocation3 + $0x89]]
    %s166 = sld [smem:[#allocation3 + $0x8a]]
    %s167 = sld [smem:[#allocation3 + $0x8b]]
    %s168 = sld [smem:[#allocation3 + $0x8c]]
    %s169 = sld [smem:[#allocation3 + $0x8d]]
    %s170 = sld [smem:[#allocation3 + $0x8e]]
    %s171 = sld [smem:[#allocation3 + $0x8f]]
    %s172 = sld [smem:[#allocation3 + $0x90]]
    %s173 = sld [smem:[#allocation3 + $0x91]]
    %s174 = sld [smem:[#allocation3 + $0x92]]
    %s175 = sld [smem:[#allocation3 + $0x93]]
    %s176 = sld [smem:[#allocation3 + $0x94]]
    %s177 = sld [smem:[#allocation3 + $0x95]]
    %s178 = sld [smem:[#allocation3 + $0x96]]
    %s179 = sld [smem:[#allocation3 + $0x97]]
    %s180 = sld [smem:[#allocation3 + $0x98]]
    %s181 = sld [smem:[#allocation3 + $0x99]]
    %s182 = sld [smem:[#allocation3 + $0x9a]]
    %s183 = sld [smem:[#allocation3 + $0x9b]]
    %s184 = sld [smem:[#allocation3 + $0x9c]]
    %s185 = sld [smem:[#allocation3 + $0x9d]]
    %s186 = sld [smem:[#allocation3 + $0x9e]]
    %s187 = sld [smem:[#allocation3 + $0x9f]]
    %s188 = sld [smem:[#allocation3 + $0xa0]]
    %s189 = sld [smem:[#allocation3 + $0xa1]]
    %s190 = sld [smem:[#allocation3 + $0xa2]]
    %s191 = sld [smem:[#allocation3 + $0xa3]]
    %s192 = sld [smem:[#allocation3 + $0xa4]]
    %s193 = sld [smem:[#allocation3 + $0xa5]]
    %s194 = sld [smem:[#allocation3 + $0xa6]]
    %s195 = sld [smem:[#allocation3 + $0xa7]]
    %s196 = sld [smem:[#allocation3 + $0xa8]]
    %v197 = vld [vmem:[#allocation4] sm:$0xff]
    %v198 = vstv %s28
    %v199 = vmul.f32 %v197, %v198
    %v200 = vstv %s36
    %v201 = vadd.f32 %v199, %v200
    %v202 = vtanh.pop %v201
    %v203 = vstv %s29
    %v204 = vmul.f32 %v197, %v203
    %v205 = vstv %s37
    %v206 = vadd.f32 %v204, %v205
    %v207 = vtanh.pop %v206
    %v208 = vstv %s30
    %v209 = vmul.f32 %v197, %v208
    %v210 = vstv %s38
    %v211 = vadd.f32 %v209, %v210
    %v212 = vtanh.pop %v211
    %v213 = vstv %s31
    %v214 = vmul.f32 %v197, %v213
    %v215 = vstv %s39
    %v216 = vadd.f32 %v214, %v215
    %v217 = vtanh.pop %v216
    %v218 = vstv %s32
    %v219 = vmul.f32 %v197, %v218
    %v220 = vstv %s40
    %v221 = vadd.f32 %v219, %v220
    %v222 = vtanh.pop %v221
    %v223 = vstv %s33
    %v224 = vmul.f32 %v197, %v223
    %v225 = vstv %s41
    %v226 = vadd.f32 %v224, %v225
    %v227 = vtanh.pop %v226
    %v228 = vstv %s34
    %v229 = vmul.f32 %v197, %v228
    %v230 = vstv %s42
    %v231 = vadd.f32 %v229, %v230
    %v232 = vtanh.pop %v231
    %v233 = vstv %s35
    %v234 = vmul.f32 %v197, %v233
    %v235 = vstv %s43
    %v236 = vadd.f32 %v234, %v235
    %v237 = vtanh.pop %v236
    %v238 = vstv %s44
    %v239 = vmul.f32 %v202, %v238
    %v240 = vstv %s108
    %v241 = vadd.f32 %v239, %v240
    %v242 = vstv %s52
    %v243 = vmul.f32 %v207, %v242
    %v244 = vadd.f32 %v241, %v243
    %v245 = vstv %s60
    %v246 = vmul.f32 %v212, %v245
    %v247 = vadd.f32 %v244, %v246
    %v248 = vstv %s68
    %v249 = vmul.f32 %v217, %v248
    %v250 = vadd.f32 %v247, %v249
    %v251 = vstv %s76
    %v252 = vmul.f32 %v222, %v251
    %v253 = vadd.f32 %v250, %v252
    %v254 = vstv %s84
    %v255 = vmul.f32 %v227, %v254
    %v256 = vadd.f32 %v253, %v255
    %v257 = vstv %s92
    %v258 = vmul.f32 %v232, %v257
    %v259 = vadd.f32 %v256, %v258
    %v260 = vstv %s100
    %v261 = vmul.f32 %v237, %v260
    %v262 = vadd.f32 %v259, %v261
    %v263 = vtanh.pop %v262
    %v264 = vstv %s45
    %v265 = vmul.f32 %v202, %v264
    %v266 = vstv %s109
    %v267 = vadd.f32 %v265, %v266
    %v268 = vstv %s53
    %v269 = vmul.f32 %v207, %v268
    %v270 = vadd.f32 %v267, %v269
    %v271 = vstv %s61
    %v272 = vmul.f32 %v212, %v271
    %v273 = vadd.f32 %v270, %v272
    %v274 = vstv %s69
    %v275 = vmul.f32 %v217, %v274
    %v276 = vadd.f32 %v273, %v275
    %v277 = vstv %s77
    %v278 = vmul.f32 %v222, %v277
    %v279 = vadd.f32 %v276, %v278
    %v280 = vstv %s85
    %v281 = vmul.f32 %v227, %v280
    %v282 = vadd.f32 %v279, %v281
    %v283 = vstv %s93
    %v284 = vmul.f32 %v232, %v283
    %v285 = vadd.f32 %v282, %v284
    %v286 = vstv %s101
    %v287 = vmul.f32 %v237, %v286
    %v288 = vadd.f32 %v285, %v287
    %v289 = vtanh.pop %v288
    %v290 = vstv %s46
    %v291 = vmul.f32 %v202, %v290
    %v292 = vstv %s110
    %v293 = vadd.f32 %v291, %v292
    %v294 = vstv %s54
    %v295 = vmul.f32 %v207, %v294
    %v296 = vadd.f32 %v293, %v295
    %v297 = vstv %s62
    %v298 = vmul.f32 %v212, %v297
    %v299 = vadd.f32 %v296, %v298
    %v300 = vstv %s70
    %v301 = vmul.f32 %v217, %v300
    %v302 = vadd.f32 %v299, %v301
    %v303 = vstv %s78
    %v304 = vmul.f32 %v222, %v303
    %v305 = vadd.f32 %v302, %v304
    %v306 = vstv %s86
    %v307 = vmul.f32 %v227, %v306
    %v308 = vadd.f32 %v305, %v307
    %v309 = vstv %s94
    %v310 = vmul.f32 %v232, %v309
    %v311 = vadd.f32 %v308, %v310
    %v312 = vstv %s102
    %v313 = vmul.f32 %v237, %v312
    %v314 = vadd.f32 %v311, %v313
    %v315 = vtanh.pop %v314
    %v316 = vstv %s47
    %v317 = vmul.f32 %v202, %v316
    %v318 = vstv %s111
    %v319 = vadd.f32 %v317, %v318
    %v320 = vstv %s55
    %v321 = vmul.f32 %v207, %v320
    %v322 = vadd.f32 %v319, %v321
    %v323 = vstv %s63
    %v324 = vmul.f32 %v212, %v323
    %v325 = vadd.f32 %v322, %v324
    %v326 = vstv %s71
    %v327 = vmul.f32 %v217, %v326
    %v328 = vadd.f32 %v325, %v327
    %v329 = vstv %s79
    %v330 = vmul.f32 %v222, %v329
    %v331 = vadd.f32 %v328, %v330
    %v332 = vstv %s87
    %v333 = vmul.f32 %v227, %v332
    %v334 = vadd.f32 %v331, %v333
    %v335 = vstv %s95
    %v336 = vmul.f32 %v232, %v335
    %v337 = vadd.f32 %v334, %v336
    %v338 = vstv %s103
    %v339 = vmul.f32 %v237, %v338
    %v340 = vadd.f32 %v337, %v339
    %v341 = vtanh.pop %v340
    %v342 = vstv %s48
    %v343 = vmul.f32 %v202, %v342
    %v344 = vstv %s112
    %v345 = vadd.f32 %v343, %v344
    %v346 = vstv %s56
    %v347 = vmul.f32 %v207, %v346
    %v348 = vadd.f32 %v345, %v347
    %v349 = vstv %s64
    %v350 = vmul.f32 %v212, %v349
    %v351 = vadd.f32 %v348, %v350
    %v352 = vstv %s72
    %v353 = vmul.f32 %v217, %v352
    %v354 = vadd.f32 %v351, %v353
    %v355 = vstv %s80
    %v356 = vmul.f32 %v222, %v355
    %v357 = vadd.f32 %v354, %v356
    %v358 = vstv %s88
    %v359 = vmul.f32 %v227, %v358
    %v360 = vadd.f32 %v357, %v359
    %v361 = vstv %s96
    %v362 = vmul.f32 %v232, %v361
    %v363 = vadd.f32 %v360, %v362
    %v364 = vstv %s104
    %v365 = vmul.f32 %v237, %v364
    %v366 = vadd.f32 %v363, %v365
    %v367 = vtanh.pop %v366
    %v368 = vstv %s49
    %v369 = vmul.f32 %v202, %v368
    %v370 = vstv %s113
    %v371 = vadd.f32 %v369, %v370
    %v372 = vstv %s57
    %v373 = vmul.f32 %v207, %v372
    %v374 = vadd.f32 %v371, %v373
    %v375 = vstv %s65
    %v376 = vmul.f32 %v212, %v375
    %v377 = vadd.f32 %v374, %v376
    %v378 = vstv %s73
    %v379 = vmul.f32 %v217, %v378
    %v380 = vadd.f32 %v377, %v379
    %v381 = vstv %s81
    %v382 = vmul.f32 %v222, %v381
    %v383 = vadd.f32 %v380, %v382
    %v384 = vstv %s89
    %v385 = vmul.f32 %v227, %v384
    %v386 = vadd.f32 %v383, %v385
    %v387 = vstv %s97
    %v388 = vmul.f32 %v232, %v387
    %v389 = vadd.f32 %v386, %v388
    %v390 = vstv %s105
    %v391 = vmul.f32 %v237, %v390
    %v392 = vadd.f32 %v389, %v391
    %v393 = vtanh.pop %v392
    %v394 = vstv %s50
    %v395 = vmul.f32 %v202, %v394
    %v396 = vstv %s114
    %v397 = vadd.f32 %v395, %v396
    %v398 = vstv %s58
    %v399 = vmul.f32 %v207, %v398
    %v400 = vadd.f32 %v397, %v399
    %v401 = vstv %s66
    %v402 = vmul.f32 %v212, %v401
    %v403 = vadd.f32 %v400, %v402
    %v404 = vstv %s74
    %v405 = vmul.f32 %v217, %v404
    %v406 = vadd.f32 %v403, %v405
    %v407 = vstv %s82
    %v408 = vmul.f32 %v222, %v407
    %v409 = vadd.f32 %v406, %v408
    %v410 = vstv %s90
    %v411 = vmul.f32 %v227, %v410
    %v412 = vadd.f32 %v409, %v411
    %v413 = vstv %s98
    %v414 = vmul.f32 %v232, %v413
    %v415 = vadd.f32 %v412, %v414
    %v416 = vstv %s106
    %v417 = vmul.f32 %v237, %v416
    %v418 = vadd.f32 %v415, %v417
    %v419 = vtanh.pop %v418
    %v420 = vstv %s51
    %v421 = vmul.f32 %v202, %v420
    %v422 = vstv %s115
    %v423 = vadd.f32 %v421, %v422
    %v424 = vstv %s59
    %v425 = vmul.f32 %v207, %v424
    %v426 = vadd.f32 %v423, %v425
    %v427 = vstv %s67
    %v428 = vmul.f32 %v212, %v427
    %v429 = vadd.f32 %v426, %v428
    %v430 = vstv %s75
    %v431 = vmul.f32 %v217, %v430
    %v432 = vadd.f32 %v429, %v431
    %v433 = vstv %s83
    %v434 = vmul.f32 %v222, %v433
    %v435 = vadd.f32 %v432, %v434
    %v436 = vstv %s91
    %v437 = vmul.f32 %v227, %v436
    %v438 = vadd.f32 %v435, %v437
    %v439 = vstv %s99
    %v440 = vmul.f32 %v232, %v439
    %v441 = vadd.f32 %v438, %v440
    %v442 = vstv %s107
    %v443 = vmul.f32 %v237, %v442
    %v444 = vadd.f32 %v441, %v443
    %v445 = vtanh.pop %v444
    %v446 = vstv %s116
    %v447 = vmul.f32 %v263, %v446
    %v448 = vstv %s180
    %v449 = vadd.f32 %v447, %v448
    %v450 = vstv %s124
    %v451 = vmul.f32 %v289, %v450
    %v452 = vadd.f32 %v449, %v451
    %v453 = vstv %s132
    %v454 = vmul.f32 %v315, %v453
    %v455 = vadd.f32 %v452, %v454
    %v456 = vstv %s140
    %v457 = vmul.f32 %v341, %v456
    %v458 = vadd.f32 %v455, %v457
    %v459 = vstv %s148
    %v460 = vmul.f32 %v367, %v459
    %v461 = vadd.f32 %v458, %v460
    %v462 = vstv %s156
    %v463 = vmul.f32 %v393, %v462
    %v464 = vadd.f32 %v461, %v463
    %v465 = vstv %s164
    %v466 = vmul.f32 %v419, %v465
    %v467 = vadd.f32 %v464, %v466
    %v468 = vstv %s172
    %v469 = vmul.f32 %v445, %v468
    %v470 = vadd.f32 %v467, %v469
    %v471 = vtanh.pop %v470
    %v472 = vstv %s117
    %v473 = vmul.f32 %v263, %v472
    %v474 = vstv %s181
    %v475 = vadd.f32 %v473, %v474
    %v476 = vstv %s125
    %v477 = vmul.f32 %v289, %v476
    %v478 = vadd.f32 %v475, %v477
    %v479 = vstv %s133
    %v480 = vmul.f32 %v315, %v479
    %v481 = vadd.f32 %v478, %v480
    %v482 = vstv %s141
    %v483 = vmul.f32 %v341, %v482
    %v484 = vadd.f32 %v481, %v483
    %v485 = vstv %s149
    %v486 = vmul.f32 %v367, %v485
    %v487 = vadd.f32 %v484, %v486
    %v488 = vstv %s157
    %v489 = vmul.f32 %v393, %v488
    %v490 = vadd.f32 %v487, %v489
    %v491 = vstv %s165
    %v492 = vmul.f32 %v419, %v491
    %v493 = vadd.f32 %v490, %v492
    %v494 = vstv %s173
    %v495 = vmul.f32 %v445, %v494
    %v496 = vadd.f32 %v493, %v495
    %v497 = vtanh.pop %v496
    %v498 = vstv %s118
    %v499 = vmul.f32 %v263, %v498
    %v500 = vstv %s182
    %v501 = vadd.f32 %v499, %v500
    %v502 = vstv %s126
    %v503 = vmul.f32 %v289, %v502
    %v504 = vadd.f32 %v501, %v503
    %v505 = vstv %s134
    %v506 = vmul.f32 %v315, %v505
    %v507 = vadd.f32 %v504, %v506
    %v508 = vstv %s142
    %v509 = vmul.f32 %v341, %v508
    %v510 = vadd.f32 %v507, %v509
    %v511 = vstv %s150
    %v512 = vmul.f32 %v367, %v511
    %v513 = vadd.f32 %v510, %v512
    %v514 = vstv %s158
    %v515 = vmul.f32 %v393, %v514
    %v516 = vadd.f32 %v513, %v515
    %v517 = vstv %s166
    %v518 = vmul.f32 %v419, %v517
    %v519 = vadd.f32 %v516, %v518
    %v520 = vstv %s174
    %v521 = vmul.f32 %v445, %v520
    %v522 = vadd.f32 %v519, %v521
    %v523 = vtanh.pop %v522
    %v524 = vstv %s119
    %v525 = vmul.f32 %v263, %v524
    %v526 = vstv %s183
    %v527 = vadd.f32 %v525, %v526
    %v528 = vstv %s127
    %v529 = vmul.f32 %v289, %v528
    %v530 = vadd.f32 %v527, %v529
    %v531 = vstv %s135
    %v532 = vmul.f32 %v315, %v531
    %v533 = vadd.f32 %v530, %v532
    %v534 = vstv %s143
    %v535 = vmul.f32 %v341, %v534
    %v536 = vadd.f32 %v533, %v535
    %v537 = vstv %s151
    %v538 = vmul.f32 %v367, %v537
    %v539 = vadd.f32 %v536, %v538
    %v540 = vstv %s159
    %v541 = vmul.f32 %v393, %v540
    %v542 = vadd.f32 %v539, %v541
    %v543 = vstv %s167
    %v544 = vmul.f32 %v419, %v543
    %v545 = vadd.f32 %v542, %v544
    %v546 = vstv %s175
    %v547 = vmul.f32 %v445, %v546
    %v548 = vadd.f32 %v545, %v547
    %v549 = vtanh.pop %v548
    %v550 = vstv %s120
    %v551 = vmul.f32 %v263, %v550
    %v552 = vstv %s184
    %v553 = vadd.f32 %v551, %v552
    %v554 = vstv %s128
    %v555 = vmul.f32 %v289, %v554
    %v556 = vadd.f32 %v553, %v555
    %v557 = vstv %s136
    %v558 = vmul.f32 %v315, %v557
    %v559 = vadd.f32 %v556, %v558
    %v560 = vstv %s144
    %v561 = vmul.f32 %v341, %v560
    %v562 = vadd.f32 %v559, %v561
    %v563 = vstv %s152
    %v564 = vmul.f32 %v367, %v563
    %v565 = vadd.f32 %v562, %v564
    %v566 = vstv %s160
    %v567 = vmul.f32 %v393, %v566
    %v568 = vadd.f32 %v565, %v567
    %v569 = vstv %s168
    %v570 = vmul.f32 %v419, %v569
    %v571 = vadd.f32 %v568, %v570
    %v572 = vstv %s176
    %v573 = vmul.f32 %v445, %v572
    %v574 = vadd.f32 %v571, %v573
    %v575 = vtanh.pop %v574
    %v576 = vstv %s121
    %v577 = vmul.f32 %v263, %v576
    %v578 = vstv %s185
    %v579 = vadd.f32 %v577, %v578
    %v580 = vstv %s129
    %v581 = vmul.f32 %v289, %v580
    %v582 = vadd.f32 %v579, %v581
    %v583 = vstv %s137
    %v584 = vmul.f32 %v315, %v583
    %v585 = vadd.f32 %v582, %v584
    %v586 = vstv %s145
    %v587 = vmul.f32 %v341, %v586
    %v588 = vadd.f32 %v585, %v587
    %v589 = vstv %s153
    %v590 = vmul.f32 %v367, %v589
    %v591 = vadd.f32 %v588, %v590
    %v592 = vstv %s161
    %v593 = vmul.f32 %v393, %v592
    %v594 = vadd.f32 %v591, %v593
    %v595 = vstv %s169
    %v596 = vmul.f32 %v419, %v595
    %v597 = vadd.f32 %v594, %v596
    %v598 = vstv %s177
    %v599 = vmul.f32 %v445, %v598
    %v600 = vadd.f32 %v597, %v599
    %v601 = vtanh.pop %v600
    %v602 = vstv %s122
    %v603 = vmul.f32 %v263, %v602
    %v604 = vstv %s186
    %v605 = vadd.f32 %v603, %v604
    %v606 = vstv %s130
    %v607 = vmul.f32 %v289, %v606
    %v608 = vadd.f32 %v605, %v607
    %v609 = vstv %s138
    %v610 = vmul.f32 %v315, %v609
    %v611 = vadd.f32 %v608, %v610
    %v612 = vstv %s146
    %v613 = vmul.f32 %v341, %v612
    %v614 = vadd.f32 %v611, %v613
    %v615 = vstv %s154
    %v616 = vmul.f32 %v367, %v615
    %v617 = vadd.f32 %v614, %v616
    %v618 = vstv %s162
    %v619 = vmul.f32 %v393, %v618
    %v620 = vadd.f32 %v617, %v619
    %v621 = vstv %s170
    %v622 = vmul.f32 %v419, %v621
    %v623 = vadd.f32 %v620, %v622
    %v624 = vstv %s178
    %v625 = vmul.f32 %v445, %v624
    %v626 = vadd.f32 %v623, %v625
    %v627 = vtanh.pop %v626
    %v628 = vstv %s123
    %v629 = vmul.f32 %v263, %v628
    %v630 = vstv %s187
    %v631 = vadd.f32 %v629, %v630
    %v632 = vstv %s131
    %v633 = vmul.f32 %v289, %v632
    %v634 = vadd.f32 %v631, %v633
    %v635 = vstv %s139
    %v636 = vmul.f32 %v315, %v635
    %v637 = vadd.f32 %v634, %v636
    %v638 = vstv %s147
    %v639 = vmul.f32 %v341, %v638
    %v640 = vadd.f32 %v637, %v639
    %v641 = vstv %s155
    %v642 = vmul.f32 %v367, %v641
    %v643 = vadd.f32 %v640, %v642
    %v644 = vstv %s163
    %v645 = vmul.f32 %v393, %v644
    %v646 = vadd.f32 %v643, %v645
    %v647 = vstv %s171
    %v648 = vmul.f32 %v419, %v647
    %v649 = vadd.f32 %v646, %v648
    %v650 = vstv %s179
    %v651 = vmul.f32 %v445, %v650
    %v652 = vadd.f32 %v649, %v651
    %v653 = vtanh.pop %v652
    %v654 = vstv %s188
    %v655 = vmul.f32 %v471, %v654
    %v656 = vstv %s196
    %v657 = vadd.f32 %v655, %v656
    %v658 = vstv %s189
    %v659 = vmul.f32 %v497, %v658
    %v660 = vadd.f32 %v657, %v659
    %v661 = vstv %s190
    %v662 = vmul.f32 %v523, %v661
    %v663 = vadd.f32 %v660, %v662
    %v664 = vstv %s191
    %v665 = vmul.f32 %v549, %v664
    %v666 = vadd.f32 %v663, %v665
    %v667 = vstv %s192
    %v668 = vmul.f32 %v575, %v667
    %v669 = vadd.f32 %v666, %v668
    %v670 = vstv %s193
    %v671 = vmul.f32 %v601, %v670
    %v672 = vadd.f32 %v669, %v671
    %v673 = vstv %s194
    %v674 = vmul.f32 %v627, %v673
    %v675 = vadd.f32 %v672, %v674
    %v676 = vstv %s195
    %v677 = vmul.f32 %v653, %v676
    %v678 = vadd.f32 %v675, %v677
    %v679 = vtanh.pop %v678
    %680 = vst [vmem:[#allocation7] sm:$0xff] %v679
    %s681 = sadd.s32 0, 8
    %s682 = scalar_lea.vmem [#allocation4], %s681
    %v683 = vld [vmem:[%s682] sm:$0xff]
    %v684 = vmul.f32 %v683, %v198
    %v685 = vadd.f32 %v684, %v200
    %v686 = vtanh.pop %v685
    %v687 = vmul.f32 %v683, %v203
    %v688 = vadd.f32 %v687, %v205
    %v689 = vtanh.pop %v688
    %v690 = vmul.f32 %v683, %v208
    %v691 = vadd.f32 %v690, %v210
    %v692 = vtanh.pop %v691
    %v693 = vmul.f32 %v683, %v213
    %v694 = vadd.f32 %v693, %v215
    %v695 = vtanh.pop %v694
    %v696 = vmul.f32 %v683, %v218
    %v697 = vadd.f32 %v696, %v220
    %v698 = vtanh.pop %v697
    %v699 = vmul.f32 %v683, %v223
    %v700 = vadd.f32 %v699, %v225
    %v701 = vtanh.pop %v700
    %v702 = vmul.f32 %v683, %v228
    %v703 = vadd.f32 %v702, %v230
    %v704 = vtanh.pop %v703
    %v705 = vmul.f32 %v683, %v233
    %v706 = vadd.f32 %v705, %v235
    %v707 = vtanh.pop %v706
    %v708 = vmul.f32 %v686, %v238
    %v709 = vadd.f32 %v708, %v240
    %v710 = vmul.f32 %v689, %v242
    %v711 = vadd.f32 %v709, %v710
    %v712 = vmul.f32 %v692, %v245
    %v713 = vadd.f32 %v711, %v712
    %v714 = vmul.f32 %v695, %v248
    %v715 = vadd.f32 %v713, %v714
    %v716 = vmul.f32 %v698, %v251
    %v717 = vadd.f32 %v715, %v716
    %v718 = vmul.f32 %v701, %v254
    %v719 = vadd.f32 %v717, %v718
    %v720 = vmul.f32 %v704, %v257
    %v721 = vadd.f32 %v719, %v720
    %v722 = vmul.f32 %v707, %v260
    %v723 = vadd.f32 %v721, %v722
    %v724 = vtanh.pop %v723
    %v725 = vmul.f32 %v686, %v264
    %v726 = vadd.f32 %v725, %v266
    %v727 = vmul.f32 %v689, %v268
    %v728 = vadd.f32 %v726, %v727
    %v729 = vmul.f32 %v692, %v271
    %v730 = vadd.f32 %v728, %v729
    %v731 = vmul.f32 %v695, %v274
    %v732 = vadd.f32 %v730, %v731
    %v733 = vmul.f32 %v698, %v277
    %v734 = vadd.f32 %v732, %v733
    %v735 = vmul.f32 %v701, %v280
    %v736 = vadd.f32 %v734, %v735
    %v737 = vmul.f32 %v704, %v283
    %v738 = vadd.f32 %v736, %v737
    %v739 = vmul.f32 %v707, %v286
    %v740 = vadd.f32 %v738, %v739
    %v741 = vtanh.pop %v740
    %v742 = vmul.f32 %v686, %v290
    %v743 = vadd.f32 %v742, %v292
    %v744 = vmul.f32 %v689, %v294
    %v745 = vadd.f32 %v743, %v744
    %v746 = vmul.f32 %v692, %v297
    %v747 = vadd.f32 %v745, %v746
    %v748 = vmul.f32 %v695, %v300
    %v749 = vadd.f32 %v747, %v748
    %v750 = vmul.f32 %v698, %v303
    %v751 = vadd.f32 %v749, %v750
    %v752 = vmul.f32 %v701, %v306
    %v753 = vadd.f32 %v751, %v752
    %v754 = vmul.f32 %v704, %v309
    %v755 = vadd.f32 %v753, %v754
    %v756 = vmul.f32 %v707, %v312
    %v757 = vadd.f32 %v755, %v756
    %v758 = vtanh.pop %v757
    %v759 = vmul.f32 %v686, %v316
    %v760 = vadd.f32 %v759, %v318
    %v761 = vmul.f32 %v689, %v320
    %v762 = vadd.f32 %v760, %v761
    %v763 = vmul.f32 %v692, %v323
    %v764 = vadd.f32 %v762, %v763
    %v765 = vmul.f32 %v695, %v326
    %v766 = vadd.f32 %v764, %v765
    %v767 = vmul.f32 %v698, %v329
    %v768 = vadd.f32 %v766, %v767
    %v769 = vmul.f32 %v701, %v332
    %v770 = vadd.f32 %v768, %v769
    %v771 = vmul.f32 %v704, %v335
    %v772 = vadd.f32 %v770, %v771
    %v773 = vmul.f32 %v707, %v338
    %v774 = vadd.f32 %v772, %v773
    %v775 = vtanh.pop %v774
    %v776 = vmul.f32 %v686, %v342
    %v777 = vadd.f32 %v776, %v344
    %v778 = vmul.f32 %v689, %v346
    %v779 = vadd.f32 %v777, %v778
    %v780 = vmul.f32 %v692, %v349
    %v781 = vadd.f32 %v779, %v780
    %v782 = vmul.f32 %v695, %v352
    %v783 = vadd.f32 %v781, %v782
    %v784 = vmul.f32 %v698, %v355
    %v785 = vadd.f32 %v783, %v784
    %v786 = vmul.f32 %v701, %v358
    %v787 = vadd.f32 %v785, %v786
    %v788 = vmul.f32 %v704, %v361
    %v789 = vadd.f32 %v787, %v788
    %v790 = vmul.f32 %v707, %v364
    %v791 = vadd.f32 %v789, %v790
    %v792 = vtanh.pop %v791
    %v793 = vmul.f32 %v686, %v368
    %v794 = vadd.f32 %v793, %v370
    %v795 = vmul.f32 %v689, %v372
    %v796 = vadd.f32 %v794, %v795
    %v797 = vmul.f32 %v692, %v375
    %v798 = vadd.f32 %v796, %v797
    %v799 = vmul.f32 %v695, %v378
    %v800 = vadd.f32 %v798, %v799
    %v801 = vmul.f32 %v698, %v381
    %v802 = vadd.f32 %v800, %v801
    %v803 = vmul.f32 %v701, %v384
    %v804 = vadd.f32 %v802, %v803
    %v805 = vmul.f32 %v704, %v387
    %v806 = vadd.f32 %v804, %v805
    %v807 = vmul.f32 %v707, %v390
    %v808 = vadd.f32 %v806, %v807
    %v809 = vtanh.pop %v808
    %v810 = vmul.f32 %v686, %v394
    %v811 = vadd.f32 %v810, %v396
    %v812 = vmul.f32 %v689, %v398
    %v813 = vadd.f32 %v811, %v812
    %v814 = vmul.f32 %v692, %v401
    %v815 = vadd.f32 %v813, %v814
    %v816 = vmul.f32 %v695, %v404
    %v817 = vadd.f32 %v815, %v816
    %v818 = vmul.f32 %v698, %v407
    %v819 = vadd.f32 %v817, %v818
    %v820 = vmul.f32 %v701, %v410
    %v821 = vadd.f32 %v819, %v820
    %v822 = vmul.f32 %v704, %v413
    %v823 = vadd.f32 %v821, %v822
    %v824 = vmul.f32 %v707, %v416
    %v825 = vadd.f32 %v823, %v824
    %v826 = vtanh.pop %v825
    %v827 = vmul.f32 %v686, %v420
    %v828 = vadd.f32 %v827, %v422
    %v829 = vmul.f32 %v689, %v424
    %v830 = vadd.f32 %v828, %v829
    %v831 = vmul.f32 %v692, %v427
    %v832 = vadd.f32 %v830, %v831
    %v833 = vmul.f32 %v695, %v430
    %v834 = vadd.f32 %v832, %v833
    %v835 = vmul.f32 %v698, %v433
    %v836 = vadd.f32 %v834, %v835
    %v837 = vmul.f32 %v701, %v436
    %v838 = vadd.f32 %v836, %v837
    %v839 = vmul.f32 %v704, %v439
    %v840 = vadd.f32 %v838, %v839
    %v841 = vmul.f32 %v707, %v442
    %v842 = vadd.f32 %v840, %v841
    %v843 = vtanh.pop %v842
    %v844 = vmul.f32 %v724, %v446
    %v845 = vadd.f32 %v844, %v448
    %v846 = vmul.f32 %v741, %v450
    %v847 = vadd.f32 %v845, %v846
    %v848 = vmul.f32 %v758, %v453
    %v849 = vadd.f32 %v847, %v848
    %v850 = vmul.f32 %v775, %v456
    %v851 = vadd.f32 %v849, %v850
    %v852 = vmul.f32 %v792, %v459
    %v853 = vadd.f32 %v851, %v852
    %v854 = vmul.f32 %v809, %v462
    %v855 = vadd.f32 %v853, %v854
    %v856 = vmul.f32 %v826, %v465
    %v857 = vadd.f32 %v855, %v856
    %v858 = vmul.f32 %v843, %v468
    %v859 = vadd.f32 %v857, %v858
    %v860 = vtanh.pop %v859
    %v861 = vmul.f32 %v724, %v472
    %v862 = vadd.f32 %v861, %v474
    %v863 = vmul.f32 %v741, %v476
    %v864 = vadd.f32 %v862, %v863
    %v865 = vmul.f32 %v758, %v479
    %v866 = vadd.f32 %v864, %v865
    %v867 = vmul.f32 %v775, %v482
    %v868 = vadd.f32 %v866, %v867
    %v869 = vmul.f32 %v792, %v485
    %v870 = vadd.f32 %v868, %v869
    %v871 = vmul.f32 %v809, %v488
    %v872 = vadd.f32 %v870, %v871
    %v873 = vmul.f32 %v826, %v491
    %v874 = vadd.f32 %v872, %v873
    %v875 = vmul.f32 %v843, %v494
    %v876 = vadd.f32 %v874, %v875
    %v877 = vtanh.pop %v876
    %v878 = vmul.f32 %v724, %v498
    %v879 = vadd.f32 %v878, %v500
    %v880 = vmul.f32 %v741, %v502
    %v881 = vadd.f32 %v879, %v880
    %v882 = vmul.f32 %v758, %v505
    %v883 = vadd.f32 %v881, %v882
    %v884 = vmul.f32 %v775, %v508
    %v885 = vadd.f32 %v883, %v884
    %v886 = vmul.f32 %v792, %v511
    %v887 = vadd.f32 %v885, %v886
    %v888 = vmul.f32 %v809, %v514
    %v889 = vadd.f32 %v887, %v888
    %v890 = vmul.f32 %v826, %v517
    %v891 = vadd.f32 %v889, %v890
    %v892 = vmul.f32 %v843, %v520
    %v893 = vadd.f32 %v891, %v892
    %v894 = vtanh.pop %v893
    %v895 = vmul.f32 %v724, %v524
    %v896 = vadd.f32 %v895, %v526
    %v897 = vmul.f32 %v741, %v528
    %v898 = vadd.f32 %v896, %v897
    %v899 = vmul.f32 %v758, %v531
    %v900 = vadd.f32 %v898, %v899
    %v901 = vmul.f32 %v775, %v534
    %v902 = vadd.f32 %v900, %v901
    %v903 = vmul.f32 %v792, %v537
    %v904 = vadd.f32 %v902, %v903
    %v905 = vmul.f32 %v809, %v540
    %v906 = vadd.f32 %v904, %v905
    %v907 = vmul.f32 %v826, %v543
    %v908 = vadd.f32 %v906, %v907
    %v909 = vmul.f32 %v843, %v546
    %v910 = vadd.f32 %v908, %v909
    %v911 = vtanh.pop %v910
    %v912 = vmul.f32 %v724, %v550
    %v913 = vadd.f32 %v912, %v552
    %v914 = vmul.f32 %v741, %v554
    %v915 = vadd.f32 %v913, %v914
    %v916 = vmul.f32 %v758, %v557
    %v917 = vadd.f32 %v915, %v916
    %v918 = vmul.f32 %v775, %v560
    %v919 = vadd.f32 %v917, %v918
    %v920 = vmul.f32 %v792, %v563
    %v921 = vadd.f32 %v919, %v920
    %v922 = vmul.f32 %v809, %v566
    %v923 = vadd.f32 %v921, %v922
    %v924 = vmul.f32 %v826, %v569
    %v925 = vadd.f32 %v923, %v924
    %v926 = vmul.f32 %v843, %v572
    %v927 = vadd.f32 %v925, %v926
    %v928 = vtanh.pop %v927
    %v929 = vmul.f32 %v724, %v576
    %v930 = vadd.f32 %v929, %v578
    %v931 = vmul.f32 %v741, %v580
    %v932 = vadd.f32 %v930, %v931
    %v933 = vmul.f32 %v758, %v583
    %v934 = vadd.f32 %v932, %v933
    %v935 = vmul.f32 %v775, %v586
    %v936 = vadd.f32 %v934, %v935
    %v937 = vmul.f32 %v792, %v589
    %v938 = vadd.f32 %v936, %v937
    %v939 = vmul.f32 %v809, %v592
    %v940 = vadd.f32 %v938, %v939
    %v941 = vmul.f32 %v826, %v595
    %v942 = vadd.f32 %v940, %v941
    %v943 = vmul.f32 %v843, %v598
    %v944 = vadd.f32 %v942, %v943
    %v945 = vtanh.pop %v944
    %v946 = vmul.f32 %v724, %v602
    %v947 = vadd.f32 %v946, %v604
    %v948 = vmul.f32 %v741, %v606
    %v949 = vadd.f32 %v947, %v948
    %v950 = vmul.f32 %v758, %v609
    %v951 = vadd.f32 %v949, %v950
    %v952 = vmul.f32 %v775, %v612
    %v953 = vadd.f32 %v951, %v952
    %v954 = vmul.f32 %v792, %v615
    %v955 = vadd.f32 %v953, %v954
    %v956 = vmul.f32 %v809, %v618
    %v957 = vadd.f32 %v955, %v956
    %v958 = vmul.f32 %v826, %v621
    %v959 = vadd.f32 %v957, %v958
    %v960 = vmul.f32 %v843, %v624
    %v961 = vadd.f32 %v959, %v960
    %v962 = vtanh.pop %v961
    %v963 = vmul.f32 %v724, %v628
    %v964 = vadd.f32 %v963, %v630
    %v965 = vmul.f32 %v741, %v632
    %v966 = vadd.f32 %v964, %v965
    %v967 = vmul.f32 %v758, %v635
    %v968 = vadd.f32 %v966, %v967
    %v969 = vmul.f32 %v775, %v638
    %v970 = vadd.f32 %v968, %v969
    %v971 = vmul.f32 %v792, %v641
    %v972 = vadd.f32 %v970, %v971
    %v973 = vmul.f32 %v809, %v644
    %v974 = vadd.f32 %v972, %v973
    %v975 = vmul.f32 %v826, %v647
    %v976 = vadd.f32 %v974, %v975
    %v977 = vmul.f32 %v843, %v650
    %v978 = vadd.f32 %v976, %v977
    %v979 = vtanh.pop %v978
    %v980 = vmul.f32 %v860, %v654
    %v981 = vadd.f32 %v980, %v656
    %v982 = vmul.f32 %v877, %v658
    %v983 = vadd.f32 %v981, %v982
    %v984 = vmul.f32 %v894, %v661
    %v985 = vadd.f32 %v983, %v984
    %v986 = vmul.f32 %v911, %v664
    %v987 = vadd.f32 %v985, %v986
    %v988 = vmul.f32 %v928, %v667
    %v989 = vadd.f32 %v987, %v988
    %v990 = vmul.f32 %v945, %v670
    %v991 = vadd.f32 %v989, %v990
    %v992 = vmul.f32 %v962, %v673
    %v993 = vadd.f32 %v991, %v992
    %v994 = vmul.f32 %v979, %v676
    %v995 = vadd.f32 %v993, %v994
    %v996 = vtanh.pop %v995
    %s997 = scalar_lea.vmem [#allocation7], %s681
    %998 = vst [vmem:[%s997] sm:$0xff] %v996
    // Predicated region
    $region10: #{tpu_custom_call.1} parent=1 // pred_check
      _
    $region11: #{tpu_custom_call.1} parent=1 // pred_check_branch
      %1000 = sbr.rel (0) target = $region13
    $region12: #{tpu_custom_call.1} parent=1 // pred_region
      %s1002 = ssub.s32 256, 256
      %1003 = vsyncadd [#allocation6], %s1002
      %s1004 = sshll.u32 [#allocation7], 4
      %s1005 = int_to_ptr.vmem [resolvable:$true] %s1004
      %1010 = dma.vmem_to_hbm [thread:$0]  %s1005, 256, %s2, [#allocation6], 128, 128, 8
    $region13: #{tpu_custom_call.1} parent=1 // pred_fallthru
      _
    // Predicated region
    $region14: #{tpu_custom_call.1} parent=1 // pred_check
      _
    $region15: #{tpu_custom_call.1} parent=1 // pred_check_branch
      %1012 = sbr.rel (0) target = $region17
    $region16: #{tpu_custom_call.1} parent=1 // pred_region
      %1013 = dma.done [#allocation6], 256
    $region17: #{tpu_custom_call.1} parent=1 // pred_fallthru
      _
    %1014 = vsyncpa [#allocation5], 1
    %1015 = vsyncpa [#allocation6], 1

</llo_original>
